<compile_context>
chip_gen: v5e
topology: v5e:2x2
jax: 0.10.0
libtpu: 0.0.40
codegen_flags: <defaults>
</compile_context>

<pallas_src>
import jax
import jax.numpy as jnp
from jax.experimental import pallas as pl
from jax.experimental.pallas import tpu as pltpu


# ----------------------------------------------------------------------------
# Kernel A: fused embedding gather + 2-layer LSTM single step
# ----------------------------------------------------------------------------
def lstm_step_kernel(tok_ref,                    # (B,) int32, SMEM (scalar prefetch)
                     emb_hbm_ref,                # (IN_VOCAB, E) f32, HBM (pl.ANY)
                     h_ref, c_ref,               # (L, B, H) f32
                     wcat0_ref, b0_ref,          # (E+H, 4H) bf16, (1, 4H) f32
                     wcat1_ref, b1_ref,          # (2H, 4H)  bf16, (1, 4H) f32
                     h_out_ref, c_out_ref,       # (L, B, H) f32 outputs
                     h1_out_ref,                 # (B, H) bf16 output (feeds the FC kernel)
                     emb_scratch,                # (B, E) f32 VMEM scratch (gathered rows)
                     dma_sems):                  # (B,) DMA semaphores
    _, B, H = h_out_ref.shape

    # Fused embedding gather: one row DMA per token, all B copies in flight at once.
    copies = []
    for b in range(B):
        cp = pltpu.make_async_copy(
            emb_hbm_ref.at[pl.ds(tok_ref[b], 1), :],
            emb_scratch.at[pl.ds(b, 1), :],
            dma_sems.at[b])
        cp.start()
        copies.append(cp)
    for cp in copies:
        cp.wait()

    def lstm_cell(xh_bf16, c, wcat_ref, b_ref):
        # Gate columns pre-permuted to (i, f, o, g): one sigmoid slab + one tanh slab (EUP).
        gates = jnp.dot(xh_bf16, wcat_ref[...],
                        preferred_element_type=jnp.float32) + b_ref[...]
        sio = jax.nn.sigmoid(gates[:, :3 * H])
        g = jnp.tanh(gates[:, 3 * H:])
        i = sio[:, 0:H]
        f = sio[:, H:2 * H]
        o = sio[:, 2 * H:3 * H]
        c_new = f * c + i * g
        h_new = o * jnp.tanh(c_new)
        return h_new, c_new

    # nn.Dropout on the embedding and between LSTM layers is identity at inference.
    x = emb_scratch[...].astype(jnp.bfloat16)                        # (B, E)
    xh0 = jnp.concatenate([x, h_ref[0].astype(jnp.bfloat16)], axis=1)
    h0, c0 = lstm_cell(xh0, c_ref[0], wcat0_ref, b0_ref)
    xh1 = jnp.concatenate([h0.astype(jnp.bfloat16),
                           h_ref[1].astype(jnp.bfloat16)], axis=1)
    h1, c1 = lstm_cell(xh1, c_ref[1], wcat1_ref, b1_ref)

    h_out_ref[0] = h0
    h_out_ref[1] = h1
    c_out_ref[0] = c0
    c_out_ref[1] = c1
    h1_out_ref[...] = h1.astype(jnp.bfloat16)


# ----------------------------------------------------------------------------
# Kernel B: FC vocab projection, tiled over the vocab axis (parallel grid axis)
# ----------------------------------------------------------------------------
def fc_kernel(h1_ref,                            # (B, H) bf16 (resident)
              wfc_ref,                           # (H, tn) bf16 vocab tile
              bfc_ref,                           # (V//tn, tn) f32 (resident)
              pred_ref):                         # (B, tn) f32 output vocab tile (lane-dense)
    j = pl.program_id(0)
    bias = bfc_ref[pl.ds(j, 1), :]               # (1, tn) slice of the resident bias block
    pred_ref[...] = (jnp.dot(h1_ref[...], wfc_ref[...],
                             preferred_element_type=jnp.float32) + bias)


# ----------------------------------------------------------------------------
# One-time weight packing (hoisted out of the decode loop)
# ----------------------------------------------------------------------------
def _permute_gate_cols(w):
    """Reorder the 4H gate columns from PyTorch (i, f, g, o) to (i, f, o, g)."""
    i, f, g, o = jnp.split(w, 4, axis=-1)
    return jnp.concatenate([i, f, o, g], axis=-1)


def pack_decoder_params(params):
    """Merge/transpose/permute/cast the weights once; reuse for every decode step."""
    H = params["w_hh_l0"].shape[1]
    wcat0 = _permute_gate_cols(
        jnp.concatenate([params["w_ih_l0"], params["w_hh_l0"]], axis=1).T
    ).astype(jnp.bfloat16)                                           # (E+H, 4H)
    wcat1 = _permute_gate_cols(
        jnp.concatenate([params["w_ih_l1"], params["w_hh_l1"]], axis=1).T
    ).astype(jnp.bfloat16)                                           # (2H, 4H)
    b0 = _permute_gate_cols((params["b_ih_l0"] + params["b_hh_l0"]).reshape(1, 4 * H))
    b1 = _permute_gate_cols((params["b_ih_l1"] + params["b_hh_l1"]).reshape(1, 4 * H))
    return {
        "emb_table": params["emb_table"].astype(jnp.float32),        # stays in HBM
        "wcat0": wcat0, "b0": b0.astype(jnp.float32),
        "wcat1": wcat1, "b1": b1.astype(jnp.float32),
        "wfc": params["w_fc"].T.astype(jnp.bfloat16),                # (H, V)
        "bfc": params["b_fc"].astype(jnp.float32),                   # (V,)
    }


# ----------------------------------------------------------------------------
# Wrapper
# ----------------------------------------------------------------------------
def decoder_forward(x_tokens, hidden, cell, packed, *, tn=512):
    """x_tokens: (B,) int32; hidden/cell: (L, B, H). Returns (pred (B, V), hidden, cell)."""
    L, B, H = hidden.shape
    in_vocab, E = packed["emb_table"].shape
    V = packed["bfc"].shape[-1]
    assert L == 2, "kernel is specialized for num_layers=2"
    assert V % tn == 0 and tn % 128 == 0

    # ---- kernel A: embedding gather + LSTM step (runs once, tiny) ----
    lstm_grid = pltpu.PrefetchScalarGridSpec(
        num_scalar_prefetch=1,                   # x_tokens -> SMEM
        grid=(1,),
        in_specs=[
            pl.BlockSpec(memory_space=pl.ANY),                       # emb table stays in HBM
            pl.BlockSpec((L, B, H), lambda i, tok: (0, 0, 0)),       # hidden
            pl.BlockSpec((L, B, H), lambda i, tok: (0, 0, 0)),       # cell
            pl.BlockSpec((E + H, 4 * H), lambda i, tok: (0, 0)),     # wcat0 (bf16)
            pl.BlockSpec((1, 4 * H), lambda i, tok: (0, 0)),         # b0
            pl.BlockSpec((2 * H, 4 * H), lambda i, tok: (0, 0)),     # wcat1 (bf16)
            pl.BlockSpec((1, 4 * H), lambda i, tok: (0, 0)),         # b1
        ],
        out_specs=(
            pl.BlockSpec((L, B, H), lambda i, tok: (0, 0, 0)),       # h_out
            pl.BlockSpec((L, B, H), lambda i, tok: (0, 0, 0)),       # c_out
            pl.BlockSpec((B, H), lambda i, tok: (0, 0)),             # h1 (bf16)
        ),
        scratch_shapes=[
            pltpu.VMEM((B, E), jnp.float32),                         # gathered embedding rows
            pltpu.SemaphoreType.DMA((B,)),
        ],
    )
    h_out, c_out, h1_bf16 = pl.pallas_call(
        lstm_step_kernel,
        out_shape=(
            jax.ShapeDtypeStruct((L, B, H), jnp.float32),
            jax.ShapeDtypeStruct((L, B, H), jnp.float32),
            jax.ShapeDtypeStruct((B, H), jnp.bfloat16),
        ),
        grid_spec=lstm_grid,
        compiler_params=pltpu.CompilerParams(
            dimension_semantics=("arbitrary",),
            vmem_limit_bytes=32 * 1024 * 1024,
        ),
    )(x_tokens.astype(jnp.int32), packed["emb_table"], hidden, cell,
      packed["wcat0"], packed["b0"], packed["wcat1"], packed["b1"])

    # ---- kernel B: FC over vocab tiles; vocab axis is parallel (v7x megacore friendly) ----
    bfc_tiled = packed["bfc"].reshape(V // tn, tn)                   # tiny (V*4 B) reshape
    fc_grid = pltpu.PrefetchScalarGridSpec(
        num_scalar_prefetch=0,
        grid=(V // tn,),
        in_specs=[
            pl.BlockSpec((B, H), lambda j: (0, 0)),                  # h1 (resident, 2 KiB)
            pl.BlockSpec((H, tn), lambda j: (0, j)),                 # wfc vocab tile (bf16)
            pl.BlockSpec((V // tn, tn), lambda j: (0, 0)),           # bias (resident)
        ],
        out_specs=pl.BlockSpec((B, tn), lambda j: (0, j)),           # lane-dense output tile
    )
    pred = pl.pallas_call(
        fc_kernel,
        out_shape=jax.ShapeDtypeStruct((B, V), jnp.float32),
        grid_spec=fc_grid,
        compiler_params=pltpu.CompilerParams(
            dimension_semantics=("parallel",),
            vmem_limit_bytes=32 * 1024 * 1024,
        ),
    )(h1_bf16, packed["wfc"], bfc_tiled)

    return pred, h_out, c_out


# ----------------------------------------------------------------------------
# Pure-JAX reference & param init
# ----------------------------------------------------------------------------
def decoder_reference(x_tokens, hidden, cell, params, weights_dtype=jnp.float32):
    """Pure-JAX reference mirroring the PyTorch forward (optionally with bf16 weights)."""
    emb = jnp.take(params["emb_table"], x_tokens, axis=0)
    H = hidden.shape[-1]
    wd = weights_dtype

    def cell_step(x, h, c, wih, whh, bih, bhh):
        wcat = jnp.concatenate([wih, whh], axis=1).T.astype(wd)
        xh = jnp.concatenate([x, h], axis=1).astype(wd)
        g = jnp.dot(xh, wcat, preferred_element_type=jnp.float32) + (bih + bhh)
        i = jax.nn.sigmoid(g[:, 0 * H:1 * H])
        f = jax.nn.sigmoid(g[:, 1 * H:2 * H])
        gg = jnp.tanh(g[:, 2 * H:3 * H])
        o = jax.nn.sigmoid(g[:, 3 * H:4 * H])
        c_new = f * c + i * gg
        return o * jnp.tanh(c_new), c_new

    h0, c0 = cell_step(emb, hidden[0], cell[0],
                       params["w_ih_l0"], params["w_hh_l0"],
                       params["b_ih_l0"], params["b_hh_l0"])
    h1, c1 = cell_step(h0, hidden[1], cell[1],
                       params["w_ih_l1"], params["w_hh_l1"],
                       params["b_ih_l1"], params["b_hh_l1"])
    pred = (jnp.dot(h1.astype(wd), params["w_fc"].T.astype(wd),
                    preferred_element_type=jnp.float32) + params["b_fc"])
    return pred, jnp.stack([h0, h1]), jnp.stack([c0, c1])


def init_params(key, input_size, embedding_size, hidden_size, output_size):
    ks = jax.random.split(key, 12)
    bound = 1.0 / jnp.sqrt(hidden_size)
    u = lambda k, shape: jax.random.uniform(k, shape, jnp.float32, -bound, bound)
    return {
        "emb_table": jax.random.normal(ks[0], (input_size, embedding_size), jnp.float32),
        "w_ih_l0": u(ks[1], (4 * hidden_size, embedding_size)),
        "w_hh_l0": u(ks[2], (4 * hidden_size, hidden_size)),
        "b_ih_l0": u(ks[3], (4 * hidden_size,)),
        "b_hh_l0": u(ks[4], (4 * hidden_size,)),
        "w_ih_l1": u(ks[5], (4 * hidden_size, hidden_size)),
        "w_hh_l1": u(ks[6], (4 * hidden_size, hidden_size)),
        "b_ih_l1": u(ks[7], (4 * hidden_size,)),
        "b_hh_l1": u(ks[8], (4 * hidden_size,)),
        "w_fc": u(ks[9], (output_size, hidden_size)),
        "b_fc": u(ks[10], (output_size,)),
    }


if __name__ == "__main__":
    # small, lane/sublane-friendly shapes consistent with the module
    B = 8            # batch
    E = 128          # embedding_size
    H = 128          # hidden_size
    V = 2048         # output_size (target vocab) -> 4 vocab tiles at tn=512
    INPUT_SIZE = 512 # decoder input vocab
    L = 2            # num_layers

    key = jax.random.PRNGKey(0)
    k_p, k_x, k_h, k_c = jax.random.split(key, 4)
    params = init_params(k_p, INPUT_SIZE, E, H, V)

    # One-time weight packing, done outside the decode loop.
    packed = pack_decoder_params(params)
    jax.block_until_ready(packed)

    x_tokens = jax.random.randint(k_x, (B,), 0, INPUT_SIZE, dtype=jnp.int32)
    hidden = jax.random.normal(k_h, (L, B, H), jnp.float32)
    cell = jax.random.normal(k_c, (L, B, H), jnp.float32)

    pred, h_new, c_new = decoder_forward(x_tokens, hidden, cell, packed, tn=512)
    jax.block_until_ready((pred, h_new, c_new))

    # Tight check vs a reference doing the same bf16-weight math.
    pred_bf, h_bf, c_bf = decoder_reference(x_tokens, hidden, cell, params,
                                            weights_dtype=jnp.bfloat16)
    # Sanity check vs the exact f32 PyTorch-equivalent math (bf16 weights relax tolerance).
    pred_f32, h_f32, c_f32 = decoder_reference(x_tokens, hidden, cell, params,
                                               weights_dtype=jnp.float32)

    assert pred.shape == (B, V) and h_new.shape == (L, B, H) and c_new.shape == (L, B, H)
    assert jnp.allclose(pred, pred_bf, atol=5e-3, rtol=5e-3)
    assert jnp.allclose(h_new, h_bf, atol=5e-3, rtol=5e-3)
    assert jnp.allclose(c_new, c_bf, atol=5e-3, rtol=5e-3)
    assert jnp.allclose(pred, pred_f32, atol=1.5e-1, rtol=5e-2)
    assert jnp.allclose(h_new, h_f32, atol=1e-1, rtol=5e-2)
    assert jnp.allclose(c_new, c_f32, atol=1e-1, rtol=5e-2)
    print("KERNEL_OK")
</pallas_src>

<mosaic_0001>
module attributes {stable_mosaic.version = 11 : i64} {
  func.func @lstm_step_kernel(%arg0: i32, %arg1: memref<8xi32, #tpu.memory_space<smem>>, %arg2: memref<512x128xf32, #tpu.memory_space<any>>, %arg3: memref<2x8x128xf32, #tpu.memory_space<vmem>>, %arg4: memref<2x8x128xf32, #tpu.memory_space<vmem>>, %arg5: memref<256x512xbf16, #tpu.memory_space<vmem>>, %arg6: memref<1x512xf32, #tpu.memory_space<vmem>>, %arg7: memref<256x512xbf16, #tpu.memory_space<vmem>>, %arg8: memref<1x512xf32, #tpu.memory_space<vmem>>, %arg9: memref<2x8x128xf32, #tpu.memory_space<vmem>>, %arg10: memref<2x8x128xf32, #tpu.memory_space<vmem>>, %arg11: memref<8x128xbf16, #tpu.memory_space<vmem>>, %arg12: memref<8x128xf32, #tpu.memory_space<vmem>>, %arg13: memref<8x!tpu.dma_semaphore, #tpu.memory_space<semaphore_mem>>) attributes {dimension_semantics = [#tpu.dimension_semantics<arbitrary>], iteration_bounds = array<i64: 1>, scalar_prefetch = 1 : i64, scratch_operands = 2 : i64, tpu.core_type = #tpu.core_type<tc>, window_params = [{}, {pipeline_mode = #tpu.pipeline_mode<synchronous>, transform_indices = @transform_1, window_bounds = array<i64: 2, 8, 128>}, {pipeline_mode = #tpu.pipeline_mode<synchronous>, transform_indices = @transform_2, window_bounds = array<i64: 2, 8, 128>}, {pipeline_mode = #tpu.pipeline_mode<synchronous>, transform_indices = @transform_3, window_bounds = array<i64: 256, 512>}, {pipeline_mode = #tpu.pipeline_mode<synchronous>, transform_indices = @transform_4, window_bounds = array<i64: 1, 512>}, {pipeline_mode = #tpu.pipeline_mode<synchronous>, transform_indices = @transform_5, window_bounds = array<i64: 256, 512>}, {pipeline_mode = #tpu.pipeline_mode<synchronous>, transform_indices = @transform_6, window_bounds = array<i64: 1, 512>}, {pipeline_mode = #tpu.pipeline_mode<synchronous>, transform_indices = @transform_7, window_bounds = array<i64: 2, 8, 128>}, {pipeline_mode = #tpu.pipeline_mode<synchronous>, transform_indices = @transform_8, window_bounds = array<i64: 2, 8, 128>}, {pipeline_mode = #tpu.pipeline_mode<synchronous>, transform_indices = @transform_9, window_bounds = array<i64: 8, 128>}]} {
    %c0 = arith.constant 0 : index
    %0 = memref.load %arg1[%c0] : memref<8xi32, #tpu.memory_space<smem>>
    %c0_i32 = arith.constant 0 : i32
    %c0_i32_0 = arith.constant 0 : i32
    %1 = tpu.memref_slice %arg2[%0, %c0_i32_0] : memref<512x128xf32, #tpu.memory_space<any>> -> memref<1x128xf32, #tpu.memory_space<any>>
    %c0_i32_1 = arith.constant 0 : i32
    %c0_i32_2 = arith.constant 0 : i32
    %2 = tpu.memref_slice %arg12[%c0_i32_1, %c0_i32_2] : memref<8x128xf32, #tpu.memory_space<vmem>> -> memref<1x128xf32, #tpu.memory_space<vmem>>
    %3 = tpu.memref_slice %arg13[%c0_i32] : memref<8x!tpu.dma_semaphore, #tpu.memory_space<semaphore_mem>> -> memref<1x!tpu.dma_semaphore, #tpu.memory_space<semaphore_mem>>
    %4 = tpu.memref_squeeze %3 : memref<1x!tpu.dma_semaphore, #tpu.memory_space<semaphore_mem>> -> memref<!tpu.dma_semaphore, #tpu.memory_space<semaphore_mem>>
    tpu.enqueue_dma source(%1 : memref<1x128xf32, #tpu.memory_space<any>>) target(%2 : memref<1x128xf32, #tpu.memory_space<vmem>>) target_semaphore(%4 : memref<!tpu.dma_semaphore, #tpu.memory_space<semaphore_mem>>)
    %c1 = arith.constant 1 : index
    %5 = memref.load %arg1[%c1] : memref<8xi32, #tpu.memory_space<smem>>
    %c1_i32 = arith.constant 1 : i32
    %c0_i32_3 = arith.constant 0 : i32
    %6 = tpu.memref_slice %arg2[%5, %c0_i32_3] : memref<512x128xf32, #tpu.memory_space<any>> -> memref<1x128xf32, #tpu.memory_space<any>>
    %c1_i32_4 = arith.constant 1 : i32
    %c0_i32_5 = arith.constant 0 : i32
    %7 = tpu.memref_slice %arg12[%c1_i32_4, %c0_i32_5] : memref<8x128xf32, #tpu.memory_space<vmem>> -> memref<1x128xf32, #tpu.memory_space<vmem>>
    %8 = tpu.memref_slice %arg13[%c1_i32] : memref<8x!tpu.dma_semaphore, #tpu.memory_space<semaphore_mem>> -> memref<1x!tpu.dma_semaphore, #tpu.memory_space<semaphore_mem>>
    %9 = tpu.memref_squeeze %8 : memref<1x!tpu.dma_semaphore, #tpu.memory_space<semaphore_mem>> -> memref<!tpu.dma_semaphore, #tpu.memory_space<semaphore_mem>>
    tpu.enqueue_dma source(%6 : memref<1x128xf32, #tpu.memory_space<any>>) target(%7 : memref<1x128xf32, #tpu.memory_space<vmem>>) target_semaphore(%9 : memref<!tpu.dma_semaphore, #tpu.memory_space<semaphore_mem>>)
    %c2 = arith.constant 2 : index
    %10 = memref.load %arg1[%c2] : memref<8xi32, #tpu.memory_space<smem>>
    %c2_i32 = arith.constant 2 : i32
    %c0_i32_6 = arith.constant 0 : i32
    %11 = tpu.memref_slice %arg2[%10, %c0_i32_6] : memref<512x128xf32, #tpu.memory_space<any>> -> memref<1x128xf32, #tpu.memory_space<any>>
    %c2_i32_7 = arith.constant 2 : i32
    %c0_i32_8 = arith.constant 0 : i32
    %12 = tpu.memref_slice %arg12[%c2_i32_7, %c0_i32_8] : memref<8x128xf32, #tpu.memory_space<vmem>> -> memref<1x128xf32, #tpu.memory_space<vmem>>
    %13 = tpu.memref_slice %arg13[%c2_i32] : memref<8x!tpu.dma_semaphore, #tpu.memory_space<semaphore_mem>> -> memref<1x!tpu.dma_semaphore, #tpu.memory_space<semaphore_mem>>
    %14 = tpu.memref_squeeze %13 : memref<1x!tpu.dma_semaphore, #tpu.memory_space<semaphore_mem>> -> memref<!tpu.dma_semaphore, #tpu.memory_space<semaphore_mem>>
    tpu.enqueue_dma source(%11 : memref<1x128xf32, #tpu.memory_space<any>>) target(%12 : memref<1x128xf32, #tpu.memory_space<vmem>>) target_semaphore(%14 : memref<!tpu.dma_semaphore, #tpu.memory_space<semaphore_mem>>)
    %c3 = arith.constant 3 : index
    %15 = memref.load %arg1[%c3] : memref<8xi32, #tpu.memory_space<smem>>
    %c3_i32 = arith.constant 3 : i32
    %c0_i32_9 = arith.constant 0 : i32
    %16 = tpu.memref_slice %arg2[%15, %c0_i32_9] : memref<512x128xf32, #tpu.memory_space<any>> -> memref<1x128xf32, #tpu.memory_space<any>>
    %c3_i32_10 = arith.constant 3 : i32
    %c0_i32_11 = arith.constant 0 : i32
    %17 = tpu.memref_slice %arg12[%c3_i32_10, %c0_i32_11] : memref<8x128xf32, #tpu.memory_space<vmem>> -> memref<1x128xf32, #tpu.memory_space<vmem>>
    %18 = tpu.memref_slice %arg13[%c3_i32] : memref<8x!tpu.dma_semaphore, #tpu.memory_space<semaphore_mem>> -> memref<1x!tpu.dma_semaphore, #tpu.memory_space<semaphore_mem>>
    %19 = tpu.memref_squeeze %18 : memref<1x!tpu.dma_semaphore, #tpu.memory_space<semaphore_mem>> -> memref<!tpu.dma_semaphore, #tpu.memory_space<semaphore_mem>>
    tpu.enqueue_dma source(%16 : memref<1x128xf32, #tpu.memory_space<any>>) target(%17 : memref<1x128xf32, #tpu.memory_space<vmem>>) target_semaphore(%19 : memref<!tpu.dma_semaphore, #tpu.memory_space<semaphore_mem>>)
    %c4 = arith.constant 4 : index
    %20 = memref.load %arg1[%c4] : memref<8xi32, #tpu.memory_space<smem>>
    %c4_i32 = arith.constant 4 : i32
    %c0_i32_12 = arith.constant 0 : i32
    %21 = tpu.memref_slice %arg2[%20, %c0_i32_12] : memref<512x128xf32, #tpu.memory_space<any>> -> memref<1x128xf32, #tpu.memory_space<any>>
    %c4_i32_13 = arith.constant 4 : i32
    %c0_i32_14 = arith.constant 0 : i32
    %22 = tpu.memref_slice %arg12[%c4_i32_13, %c0_i32_14] : memref<8x128xf32, #tpu.memory_space<vmem>> -> memref<1x128xf32, #tpu.memory_space<vmem>>
    %23 = tpu.memref_slice %arg13[%c4_i32] : memref<8x!tpu.dma_semaphore, #tpu.memory_space<semaphore_mem>> -> memref<1x!tpu.dma_semaphore, #tpu.memory_space<semaphore_mem>>
    %24 = tpu.memref_squeeze %23 : memref<1x!tpu.dma_semaphore, #tpu.memory_space<semaphore_mem>> -> memref<!tpu.dma_semaphore, #tpu.memory_space<semaphore_mem>>
    tpu.enqueue_dma source(%21 : memref<1x128xf32, #tpu.memory_space<any>>) target(%22 : memref<1x128xf32, #tpu.memory_space<vmem>>) target_semaphore(%24 : memref<!tpu.dma_semaphore, #tpu.memory_space<semaphore_mem>>)
    %c5 = arith.constant 5 : index
    %25 = memref.load %arg1[%c5] : memref<8xi32, #tpu.memory_space<smem>>
    %c5_i32 = arith.constant 5 : i32
    %c0_i32_15 = arith.constant 0 : i32
    %26 = tpu.memref_slice %arg2[%25, %c0_i32_15] : memref<512x128xf32, #tpu.memory_space<any>> -> memref<1x128xf32, #tpu.memory_space<any>>
    %c5_i32_16 = arith.constant 5 : i32
    %c0_i32_17 = arith.constant 0 : i32
    %27 = tpu.memref_slice %arg12[%c5_i32_16, %c0_i32_17] : memref<8x128xf32, #tpu.memory_space<vmem>> -> memref<1x128xf32, #tpu.memory_space<vmem>>
    %28 = tpu.memref_slice %arg13[%c5_i32] : memref<8x!tpu.dma_semaphore, #tpu.memory_space<semaphore_mem>> -> memref<1x!tpu.dma_semaphore, #tpu.memory_space<semaphore_mem>>
    %29 = tpu.memref_squeeze %28 : memref<1x!tpu.dma_semaphore, #tpu.memory_space<semaphore_mem>> -> memref<!tpu.dma_semaphore, #tpu.memory_space<semaphore_mem>>
    tpu.enqueue_dma source(%26 : memref<1x128xf32, #tpu.memory_space<any>>) target(%27 : memref<1x128xf32, #tpu.memory_space<vmem>>) target_semaphore(%29 : memref<!tpu.dma_semaphore, #tpu.memory_space<semaphore_mem>>)
    %c6 = arith.constant 6 : index
    %30 = memref.load %arg1[%c6] : memref<8xi32, #tpu.memory_space<smem>>
    %c6_i32 = arith.constant 6 : i32
    %c0_i32_18 = arith.constant 0 : i32
    %31 = tpu.memref_slice %arg2[%30, %c0_i32_18] : memref<512x128xf32, #tpu.memory_space<any>> -> memref<1x128xf32, #tpu.memory_space<any>>
    %c6_i32_19 = arith.constant 6 : i32
    %c0_i32_20 = arith.constant 0 : i32
    %32 = tpu.memref_slice %arg12[%c6_i32_19, %c0_i32_20] : memref<8x128xf32, #tpu.memory_space<vmem>> -> memref<1x128xf32, #tpu.memory_space<vmem>>
    %33 = tpu.memref_slice %arg13[%c6_i32] : memref<8x!tpu.dma_semaphore, #tpu.memory_space<semaphore_mem>> -> memref<1x!tpu.dma_semaphore, #tpu.memory_space<semaphore_mem>>
    %34 = tpu.memref_squeeze %33 : memref<1x!tpu.dma_semaphore, #tpu.memory_space<semaphore_mem>> -> memref<!tpu.dma_semaphore, #tpu.memory_space<semaphore_mem>>
    tpu.enqueue_dma source(%31 : memref<1x128xf32, #tpu.memory_space<any>>) target(%32 : memref<1x128xf32, #tpu.memory_space<vmem>>) target_semaphore(%34 : memref<!tpu.dma_semaphore, #tpu.memory_space<semaphore_mem>>)
    %c7 = arith.constant 7 : index
    %35 = memref.load %arg1[%c7] : memref<8xi32, #tpu.memory_space<smem>>
    %c7_i32 = arith.constant 7 : i32
    %c0_i32_21 = arith.constant 0 : i32
    %36 = tpu.memref_slice %arg2[%35, %c0_i32_21] : memref<512x128xf32, #tpu.memory_space<any>> -> memref<1x128xf32, #tpu.memory_space<any>>
    %c7_i32_22 = arith.constant 7 : i32
    %c0_i32_23 = arith.constant 0 : i32
    %37 = tpu.memref_slice %arg12[%c7_i32_22, %c0_i32_23] : memref<8x128xf32, #tpu.memory_space<vmem>> -> memref<1x128xf32, #tpu.memory_space<vmem>>
    %38 = tpu.memref_slice %arg13[%c7_i32] : memref<8x!tpu.dma_semaphore, #tpu.memory_space<semaphore_mem>> -> memref<1x!tpu.dma_semaphore, #tpu.memory_space<semaphore_mem>>
    %39 = tpu.memref_squeeze %38 : memref<1x!tpu.dma_semaphore, #tpu.memory_space<semaphore_mem>> -> memref<!tpu.dma_semaphore, #tpu.memory_space<semaphore_mem>>
    tpu.enqueue_dma source(%36 : memref<1x128xf32, #tpu.memory_space<any>>) target(%37 : memref<1x128xf32, #tpu.memory_space<vmem>>) target_semaphore(%39 : memref<!tpu.dma_semaphore, #tpu.memory_space<semaphore_mem>>)
    %c0_i32_24 = arith.constant 0 : i32
    %c0_i32_25 = arith.constant 0 : i32
    %40 = tpu.memref_slice %arg2[%0, %c0_i32_25] : memref<512x128xf32, #tpu.memory_space<any>> -> memref<1x128xf32, #tpu.memory_space<any>>
    %c0_i32_26 = arith.constant 0 : i32
    %c0_i32_27 = arith.constant 0 : i32
    %41 = tpu.memref_slice %arg12[%c0_i32_26, %c0_i32_27] : memref<8x128xf32, #tpu.memory_space<vmem>> -> memref<1x128xf32, #tpu.memory_space<vmem>>
    %42 = tpu.memref_slice %arg13[%c0_i32_24] : memref<8x!tpu.dma_semaphore, #tpu.memory_space<semaphore_mem>> -> memref<1x!tpu.dma_semaphore, #tpu.memory_space<semaphore_mem>>
    %43 = tpu.memref_squeeze %42 : memref<1x!tpu.dma_semaphore, #tpu.memory_space<semaphore_mem>> -> memref<!tpu.dma_semaphore, #tpu.memory_space<semaphore_mem>>
    tpu.wait_dma2 semaphore(%43 : memref<!tpu.dma_semaphore, #tpu.memory_space<semaphore_mem>>) src(%40 : memref<1x128xf32, #tpu.memory_space<any>>) dst(%41 : memref<1x128xf32, #tpu.memory_space<vmem>>)
    %c1_i32_28 = arith.constant 1 : i32
    %c0_i32_29 = arith.constant 0 : i32
    %44 = tpu.memref_slice %arg2[%5, %c0_i32_29] : memref<512x128xf32, #tpu.memory_space<any>> -> memref<1x128xf32, #tpu.memory_space<any>>
    %c1_i32_30 = arith.constant 1 : i32
    %c0_i32_31 = arith.constant 0 : i32
    %45 = tpu.memref_slice %arg12[%c1_i32_30, %c0_i32_31] : memref<8x128xf32, #tpu.memory_space<vmem>> -> memref<1x128xf32, #tpu.memory_space<vmem>>
    %46 = tpu.memref_slice %arg13[%c1_i32_28] : memref<8x!tpu.dma_semaphore, #tpu.memory_space<semaphore_mem>> -> memref<1x!tpu.dma_semaphore, #tpu.memory_space<semaphore_mem>>
    %47 = tpu.memref_squeeze %46 : memref<1x!tpu.dma_semaphore, #tpu.memory_space<semaphore_mem>> -> memref<!tpu.dma_semaphore, #tpu.memory_space<semaphore_mem>>
    tpu.wait_dma2 semaphore(%47 : memref<!tpu.dma_semaphore, #tpu.memory_space<semaphore_mem>>) src(%44 : memref<1x128xf32, #tpu.memory_space<any>>) dst(%45 : memref<1x128xf32, #tpu.memory_space<vmem>>)
    %c2_i32_32 = arith.constant 2 : i32
    %c0_i32_33 = arith.constant 0 : i32
    %48 = tpu.memref_slice %arg2[%10, %c0_i32_33] : memref<512x128xf32, #tpu.memory_space<any>> -> memref<1x128xf32, #tpu.memory_space<any>>
    %c2_i32_34 = arith.constant 2 : i32
    %c0_i32_35 = arith.constant 0 : i32
    %49 = tpu.memref_slice %arg12[%c2_i32_34, %c0_i32_35] : memref<8x128xf32, #tpu.memory_space<vmem>> -> memref<1x128xf32, #tpu.memory_space<vmem>>
    %50 = tpu.memref_slice %arg13[%c2_i32_32] : memref<8x!tpu.dma_semaphore, #tpu.memory_space<semaphore_mem>> -> memref<1x!tpu.dma_semaphore, #tpu.memory_space<semaphore_mem>>
    %51 = tpu.memref_squeeze %50 : memref<1x!tpu.dma_semaphore, #tpu.memory_space<semaphore_mem>> -> memref<!tpu.dma_semaphore, #tpu.memory_space<semaphore_mem>>
    tpu.wait_dma2 semaphore(%51 : memref<!tpu.dma_semaphore, #tpu.memory_space<semaphore_mem>>) src(%48 : memref<1x128xf32, #tpu.memory_space<any>>) dst(%49 : memref<1x128xf32, #tpu.memory_space<vmem>>)
    %c3_i32_36 = arith.constant 3 : i32
    %c0_i32_37 = arith.constant 0 : i32
    %52 = tpu.memref_slice %arg2[%15, %c0_i32_37] : memref<512x128xf32, #tpu.memory_space<any>> -> memref<1x128xf32, #tpu.memory_space<any>>
    %c3_i32_38 = arith.constant 3 : i32
    %c0_i32_39 = arith.constant 0 : i32
    %53 = tpu.memref_slice %arg12[%c3_i32_38, %c0_i32_39] : memref<8x128xf32, #tpu.memory_space<vmem>> -> memref<1x128xf32, #tpu.memory_space<vmem>>
    %54 = tpu.memref_slice %arg13[%c3_i32_36] : memref<8x!tpu.dma_semaphore, #tpu.memory_space<semaphore_mem>> -> memref<1x!tpu.dma_semaphore, #tpu.memory_space<semaphore_mem>>
    %55 = tpu.memref_squeeze %54 : memref<1x!tpu.dma_semaphore, #tpu.memory_space<semaphore_mem>> -> memref<!tpu.dma_semaphore, #tpu.memory_space<semaphore_mem>>
    tpu.wait_dma2 semaphore(%55 : memref<!tpu.dma_semaphore, #tpu.memory_space<semaphore_mem>>) src(%52 : memref<1x128xf32, #tpu.memory_space<any>>) dst(%53 : memref<1x128xf32, #tpu.memory_space<vmem>>)
    %c4_i32_40 = arith.constant 4 : i32
    %c0_i32_41 = arith.constant 0 : i32
    %56 = tpu.memref_slice %arg2[%20, %c0_i32_41] : memref<512x128xf32, #tpu.memory_space<any>> -> memref<1x128xf32, #tpu.memory_space<any>>
    %c4_i32_42 = arith.constant 4 : i32
    %c0_i32_43 = arith.constant 0 : i32
    %57 = tpu.memref_slice %arg12[%c4_i32_42, %c0_i32_43] : memref<8x128xf32, #tpu.memory_space<vmem>> -> memref<1x128xf32, #tpu.memory_space<vmem>>
    %58 = tpu.memref_slice %arg13[%c4_i32_40] : memref<8x!tpu.dma_semaphore, #tpu.memory_space<semaphore_mem>> -> memref<1x!tpu.dma_semaphore, #tpu.memory_space<semaphore_mem>>
    %59 = tpu.memref_squeeze %58 : memref<1x!tpu.dma_semaphore, #tpu.memory_space<semaphore_mem>> -> memref<!tpu.dma_semaphore, #tpu.memory_space<semaphore_mem>>
    tpu.wait_dma2 semaphore(%59 : memref<!tpu.dma_semaphore, #tpu.memory_space<semaphore_mem>>) src(%56 : memref<1x128xf32, #tpu.memory_space<any>>) dst(%57 : memref<1x128xf32, #tpu.memory_space<vmem>>)
    %c5_i32_44 = arith.constant 5 : i32
    %c0_i32_45 = arith.constant 0 : i32
    %60 = tpu.memref_slice %arg2[%25, %c0_i32_45] : memref<512x128xf32, #tpu.memory_space<any>> -> memref<1x128xf32, #tpu.memory_space<any>>
    %c5_i32_46 = arith.constant 5 : i32
    %c0_i32_47 = arith.constant 0 : i32
    %61 = tpu.memref_slice %arg12[%c5_i32_46, %c0_i32_47] : memref<8x128xf32, #tpu.memory_space<vmem>> -> memref<1x128xf32, #tpu.memory_space<vmem>>
    %62 = tpu.memref_slice %arg13[%c5_i32_44] : memref<8x!tpu.dma_semaphore, #tpu.memory_space<semaphore_mem>> -> memref<1x!tpu.dma_semaphore, #tpu.memory_space<semaphore_mem>>
    %63 = tpu.memref_squeeze %62 : memref<1x!tpu.dma_semaphore, #tpu.memory_space<semaphore_mem>> -> memref<!tpu.dma_semaphore, #tpu.memory_space<semaphore_mem>>
    tpu.wait_dma2 semaphore(%63 : memref<!tpu.dma_semaphore, #tpu.memory_space<semaphore_mem>>) src(%60 : memref<1x128xf32, #tpu.memory_space<any>>) dst(%61 : memref<1x128xf32, #tpu.memory_space<vmem>>)
    %c6_i32_48 = arith.constant 6 : i32
    %c0_i32_49 = arith.constant 0 : i32
    %64 = tpu.memref_slice %arg2[%30, %c0_i32_49] : memref<512x128xf32, #tpu.memory_space<any>> -> memref<1x128xf32, #tpu.memory_space<any>>
    %c6_i32_50 = arith.constant 6 : i32
    %c0_i32_51 = arith.constant 0 : i32
    %65 = tpu.memref_slice %arg12[%c6_i32_50, %c0_i32_51] : memref<8x128xf32, #tpu.memory_space<vmem>> -> memref<1x128xf32, #tpu.memory_space<vmem>>
    %66 = tpu.memref_slice %arg13[%c6_i32_48] : memref<8x!tpu.dma_semaphore, #tpu.memory_space<semaphore_mem>> -> memref<1x!tpu.dma_semaphore, #tpu.memory_space<semaphore_mem>>
    %67 = tpu.memref_squeeze %66 : memref<1x!tpu.dma_semaphore, #tpu.memory_space<semaphore_mem>> -> memref<!tpu.dma_semaphore, #tpu.memory_space<semaphore_mem>>
    tpu.wait_dma2 semaphore(%67 : memref<!tpu.dma_semaphore, #tpu.memory_space<semaphore_mem>>) src(%64 : memref<1x128xf32, #tpu.memory_space<any>>) dst(%65 : memref<1x128xf32, #tpu.memory_space<vmem>>)
    %c7_i32_52 = arith.constant 7 : i32
    %c0_i32_53 = arith.constant 0 : i32
    %68 = tpu.memref_slice %arg2[%35, %c0_i32_53] : memref<512x128xf32, #tpu.memory_space<any>> -> memref<1x128xf32, #tpu.memory_space<any>>
    %c7_i32_54 = arith.constant 7 : i32
    %c0_i32_55 = arith.constant 0 : i32
    %69 = tpu.memref_slice %arg12[%c7_i32_54, %c0_i32_55] : memref<8x128xf32, #tpu.memory_space<vmem>> -> memref<1x128xf32, #tpu.memory_space<vmem>>
    %70 = tpu.memref_slice %arg13[%c7_i32_52] : memref<8x!tpu.dma_semaphore, #tpu.memory_space<semaphore_mem>> -> memref<1x!tpu.dma_semaphore, #tpu.memory_space<semaphore_mem>>
    %71 = tpu.memref_squeeze %70 : memref<1x!tpu.dma_semaphore, #tpu.memory_space<semaphore_mem>> -> memref<!tpu.dma_semaphore, #tpu.memory_space<semaphore_mem>>
    tpu.wait_dma2 semaphore(%71 : memref<!tpu.dma_semaphore, #tpu.memory_space<semaphore_mem>>) src(%68 : memref<1x128xf32, #tpu.memory_space<any>>) dst(%69 : memref<1x128xf32, #tpu.memory_space<vmem>>)
    %c0_56 = arith.constant 0 : index
    %c0_57 = arith.constant 0 : index
    %72 = vector.load %arg12[%c0_56, %c0_57] : memref<8x128xf32, #tpu.memory_space<vmem>>, vector<8x128xf32>
    %73 = arith.truncf %72 : vector<8x128xf32> to vector<8x128xbf16>
    %c0_58 = arith.constant 0 : index
    %c0_59 = arith.constant 0 : index
    %c0_60 = arith.constant 0 : index
    %74 = vector.load %arg3[%c0_58, %c0_59, %c0_60] : memref<2x8x128xf32, #tpu.memory_space<vmem>>, vector<1x8x128xf32>
    %75 = vector.shape_cast %74 : vector<1x8x128xf32> to vector<8x128xf32>
    %76 = arith.truncf %75 : vector<8x128xf32> to vector<8x128xbf16>
    %77 = tpu.concatenate %73, %76 in 1 : vector<8x128xbf16>, vector<8x128xbf16> -> vector<8x256xbf16>
    %c0_61 = arith.constant 0 : index
    %c0_62 = arith.constant 0 : index
    %c0_63 = arith.constant 0 : index
    %78 = vector.load %arg4[%c0_61, %c0_62, %c0_63] : memref<2x8x128xf32, #tpu.memory_space<vmem>>, vector<1x8x128xf32>
    %79 = vector.shape_cast %78 : vector<1x8x128xf32> to vector<8x128xf32>
    %c0_64 = arith.constant 0 : index
    %c0_65 = arith.constant 0 : index
    %80 = vector.load %arg5[%c0_64, %c0_65] : memref<256x512xbf16, #tpu.memory_space<vmem>>, vector<256x512xbf16>
    %cst = arith.constant dense<0.000000e+00> : vector<8x512xf32>
    %81 = tpu.matmul %77, %80, %cst {dimension_numbers = #tpu.dot_dimension_numbers<[1], [0], [0], [1], [0, 0, 1, 1], [], []>} : vector<8x256xbf16>, vector<256x512xbf16>, vector<8x512xf32> -> vector<8x512xf32>
    %c0_66 = arith.constant 0 : index
    %c0_67 = arith.constant 0 : index
    %82 = vector.load %arg6[%c0_66, %c0_67] : memref<1x512xf32, #tpu.memory_space<vmem>>, vector<1x512xf32>
    %83 = vector.broadcast %82 : vector<1x512xf32> to vector<8x512xf32>
    %84 = arith.addf %81, %83 : vector<8x512xf32>
    %85 = vector.extract_strided_slice %84 {offsets = [0, 0], sizes = [8, 384], strides = [1, 1]} : vector<8x512xf32> to vector<8x384xf32>
    %86 = arith.negf %85 : vector<8x384xf32>
    %87 = math.exp %86 : vector<8x384xf32>
    %cst_68 = arith.constant 1.000000e+00 : f32
    %88 = vector.broadcast %cst_68 : f32 to vector<8x384xf32>
    %89 = arith.addf %88, %87 : vector<8x384xf32>
    %90 = arith.divf %88, %89 : vector<8x384xf32>
    %91 = vector.extract_strided_slice %84 {offsets = [0, 384], sizes = [8, 128], strides = [1, 1]} : vector<8x512xf32> to vector<8x128xf32>
    %92 = math.tanh %91 : vector<8x128xf32>
    %93 = vector.extract_strided_slice %90 {offsets = [0, 0], sizes = [8, 128], strides = [1, 1]} : vector<8x384xf32> to vector<8x128xf32>
    %94 = vector.extract_strided_slice %90 {offsets = [0, 128], sizes = [8, 128], strides = [1, 1]} : vector<8x384xf32> to vector<8x128xf32>
    %95 = vector.extract_strided_slice %90 {offsets = [0, 256], sizes = [8, 128], strides = [1, 1]} : vector<8x384xf32> to vector<8x128xf32>
    %96 = arith.mulf %94, %79 : vector<8x128xf32>
    %97 = arith.mulf %93, %92 : vector<8x128xf32>
    %98 = arith.addf %96, %97 : vector<8x128xf32>
    %99 = math.tanh %98 : vector<8x128xf32>
    %100 = arith.mulf %95, %99 : vector<8x128xf32>
    %101 = arith.truncf %100 : vector<8x128xf32> to vector<8x128xbf16>
    %c1_69 = arith.constant 1 : index
    %c0_70 = arith.constant 0 : index
    %c0_71 = arith.constant 0 : index
    %102 = vector.load %arg3[%c1_69, %c0_70, %c0_71] : memref<2x8x128xf32, #tpu.memory_space<vmem>>, vector<1x8x128xf32>
    %103 = vector.shape_cast %102 : vector<1x8x128xf32> to vector<8x128xf32>
    %104 = arith.truncf %103 : vector<8x128xf32> to vector<8x128xbf16>
    %105 = tpu.concatenate %101, %104 in 1 : vector<8x128xbf16>, vector<8x128xbf16> -> vector<8x256xbf16>
    %c1_72 = arith.constant 1 : index
    %c0_73 = arith.constant 0 : index
    %c0_74 = arith.constant 0 : index
    %106 = vector.load %arg4[%c1_72, %c0_73, %c0_74] : memref<2x8x128xf32, #tpu.memory_space<vmem>>, vector<1x8x128xf32>
    %107 = vector.shape_cast %106 : vector<1x8x128xf32> to vector<8x128xf32>
    %c0_75 = arith.constant 0 : index
    %c0_76 = arith.constant 0 : index
    %108 = vector.load %arg7[%c0_75, %c0_76] : memref<256x512xbf16, #tpu.memory_space<vmem>>, vector<256x512xbf16>
    %cst_77 = arith.constant dense<0.000000e+00> : vector<8x512xf32>
    %109 = tpu.matmul %105, %108, %cst_77 {dimension_numbers = #tpu.dot_dimension_numbers<[1], [0], [0], [1], [0, 0, 1, 1], [], []>} : vector<8x256xbf16>, vector<256x512xbf16>, vector<8x512xf32> -> vector<8x512xf32>
    %c0_78 = arith.constant 0 : index
    %c0_79 = arith.constant 0 : index
    %110 = vector.load %arg8[%c0_78, %c0_79] : memref<1x512xf32, #tpu.memory_space<vmem>>, vector<1x512xf32>
    %111 = vector.broadcast %110 : vector<1x512xf32> to vector<8x512xf32>
    %112 = arith.addf %109, %111 : vector<8x512xf32>
    %113 = vector.extract_strided_slice %112 {offsets = [0, 0], sizes = [8, 384], strides = [1, 1]} : vector<8x512xf32> to vector<8x384xf32>
    %114 = arith.negf %113 : vector<8x384xf32>
    %115 = math.exp %114 : vector<8x384xf32>
    %cst_80 = arith.constant 1.000000e+00 : f32
    %116 = vector.broadcast %cst_80 : f32 to vector<8x384xf32>
    %117 = arith.addf %116, %115 : vector<8x384xf32>
    %118 = arith.divf %116, %117 : vector<8x384xf32>
    %119 = vector.extract_strided_slice %112 {offsets = [0, 384], sizes = [8, 128], strides = [1, 1]} : vector<8x512xf32> to vector<8x128xf32>
    %120 = math.tanh %119 : vector<8x128xf32>
    %121 = vector.extract_strided_slice %118 {offsets = [0, 0], sizes = [8, 128], strides = [1, 1]} : vector<8x384xf32> to vector<8x128xf32>
    %122 = vector.extract_strided_slice %118 {offsets = [0, 128], sizes = [8, 128], strides = [1, 1]} : vector<8x384xf32> to vector<8x128xf32>
    %123 = vector.extract_strided_slice %118 {offsets = [0, 256], sizes = [8, 128], strides = [1, 1]} : vector<8x384xf32> to vector<8x128xf32>
    %124 = arith.mulf %122, %107 : vector<8x128xf32>
    %125 = arith.mulf %121, %120 : vector<8x128xf32>
    %126 = arith.addf %124, %125 : vector<8x128xf32>
    %127 = math.tanh %126 : vector<8x128xf32>
    %128 = arith.mulf %123, %127 : vector<8x128xf32>
    %c0_81 = arith.constant 0 : index
    %c0_82 = arith.constant 0 : index
    %c0_83 = arith.constant 0 : index
    %129 = vector.load %arg9[%c0_81, %c0_82, %c0_83] : memref<2x8x128xf32, #tpu.memory_space<vmem>>, vector<1x8x128xf32>
    %130 = vector.shape_cast %129 : vector<1x8x128xf32> to vector<8x128xf32>
    %131 = vector.shape_cast %100 : vector<8x128xf32> to vector<1x8x128xf32>
    tpu.vector_store %arg9[%c0_81, %c0_82, %c0_83], %131 {strides = array<i32>} : memref<2x8x128xf32, #tpu.memory_space<vmem>>, vector<1x8x128xf32>,
    %c1_84 = arith.constant 1 : index
    %c0_85 = arith.constant 0 : index
    %c0_86 = arith.constant 0 : index
    %132 = vector.load %arg9[%c1_84, %c0_85, %c0_86] : memref<2x8x128xf32, #tpu.memory_space<vmem>>, vector<1x8x128xf32>
    %133 = vector.shape_cast %132 : vector<1x8x128xf32> to vector<8x128xf32>
    %134 = vector.shape_cast %128 : vector<8x128xf32> to vector<1x8x128xf32>
    tpu.vector_store %arg9[%c1_84, %c0_85, %c0_86], %134 {strides = array<i32>} : memref<2x8x128xf32, #tpu.memory_space<vmem>>, vector<1x8x128xf32>,
    %c0_87 = arith.constant 0 : index
    %c0_88 = arith.constant 0 : index
    %c0_89 = arith.constant 0 : index
    %135 = vector.load %arg10[%c0_87, %c0_88, %c0_89] : memref<2x8x128xf32, #tpu.memory_space<vmem>>, vector<1x8x128xf32>
    %136 = vector.shape_cast %135 : vector<1x8x128xf32> to vector<8x128xf32>
    %137 = vector.shape_cast %98 : vector<8x128xf32> to vector<1x8x128xf32>
    tpu.vector_store %arg10[%c0_87, %c0_88, %c0_89], %137 {strides = array<i32>} : memref<2x8x128xf32, #tpu.memory_space<vmem>>, vector<1x8x128xf32>,
    %c1_90 = arith.constant 1 : index
    %c0_91 = arith.constant 0 : index
    %c0_92 = arith.constant 0 : index
    %138 = vector.load %arg10[%c1_90, %c0_91, %c0_92] : memref<2x8x128xf32, #tpu.memory_space<vmem>>, vector<1x8x128xf32>
    %139 = vector.shape_cast %138 : vector<1x8x128xf32> to vector<8x128xf32>
    %140 = vector.shape_cast %126 : vector<8x128xf32> to vector<1x8x128xf32>
    tpu.vector_store %arg10[%c1_90, %c0_91, %c0_92], %140 {strides = array<i32>} : memref<2x8x128xf32, #tpu.memory_space<vmem>>, vector<1x8x128xf32>,
    %141 = arith.truncf %128 : vector<8x128xf32> to vector<8x128xbf16>
    %c0_93 = arith.constant 0 : index
    %c0_94 = arith.constant 0 : index
    %142 = vector.load %arg11[%c0_93, %c0_94] : memref<8x128xbf16, #tpu.memory_space<vmem>>, vector<8x128xbf16>
    tpu.vector_store %arg11[%c0_93, %c0_94], %141 {strides = array<i32>} : memref<8x128xbf16, #tpu.memory_space<vmem>>, vector<8x128xbf16>,
    return
  }
  func.func @transform_1(%arg0: i32, %arg1: memref<8xi32, #tpu.memory_space<smem>>) -> (i32, i32, i32) {
    %c0_i32 = arith.constant 0 : i32
    %c0_i32_0 = arith.constant 0 : i32
    %c0_i32_1 = arith.constant 0 : i32
    %c0_i32_2 = arith.constant 0 : i32
    return %c0_i32, %c0_i32_0, %c0_i32_1 : i32, i32, i32
  }
  func.func @transform_2(%arg0: i32, %arg1: memref<8xi32, #tpu.memory_space<smem>>) -> (i32, i32, i32) {
    %c0_i32 = arith.constant 0 : i32
    %c0_i32_0 = arith.constant 0 : i32
    %c0_i32_1 = arith.constant 0 : i32
    %c0_i32_2 = arith.constant 0 : i32
    return %c0_i32, %c0_i32_0, %c0_i32_1 : i32, i32, i32
  }
  func.func @transform_3(%arg0: i32, %arg1: memref<8xi32, #tpu.memory_space<smem>>) -> (i32, i32) {
    %c0_i32 = arith.constant 0 : i32
    %c0_i32_0 = arith.constant 0 : i32
    %c0_i32_1 = arith.constant 0 : i32
    return %c0_i32, %c0_i32_0 : i32, i32
  }
  func.func @transform_4(%arg0: i32, %arg1: memref<8xi32, #tpu.memory_space<smem>>) -> (i32, i32) {
    %c0_i32 = arith.constant 0 : i32
    %c0_i32_0 = arith.constant 0 : i32
    %c0_i32_1 = arith.constant 0 : i32
    return %c0_i32, %c0_i32_0 : i32, i32
  }
  func.func @transform_5(%arg0: i32, %arg1: memref<8xi32, #tpu.memory_space<smem>>) -> (i32, i32) {
    %c0_i32 = arith.constant 0 : i32
    %c0_i32_0 = arith.constant 0 : i32
    %c0_i32_1 = arith.constant 0 : i32
    return %c0_i32, %c0_i32_0 : i32, i32
  }
  func.func @transform_6(%arg0: i32, %arg1: memref<8xi32, #tpu.memory_space<smem>>) -> (i32, i32) {
    %c0_i32 = arith.constant 0 : i32
    %c0_i32_0 = arith.constant 0 : i32
    %c0_i32_1 = arith.constant 0 : i32
    return %c0_i32, %c0_i32_0 : i32, i32
  }
  func.func @transform_7(%arg0: i32, %arg1: memref<8xi32, #tpu.memory_space<smem>>) -> (i32, i32, i32) {
    %c0_i32 = arith.constant 0 : i32
    %c0_i32_0 = arith.constant 0 : i32
    %c0_i32_1 = arith.constant 0 : i32
    %c0_i32_2 = arith.constant 0 : i32
    return %c0_i32, %c0_i32_0, %c0_i32_1 : i32, i32, i32
  }
  func.func @transform_8(%arg0: i32, %arg1: memref<8xi32, #tpu.memory_space<smem>>) -> (i32, i32, i32) {
    %c0_i32 = arith.constant 0 : i32
    %c0_i32_0 = arith.constant 0 : i32
    %c0_i32_1 = arith.constant 0 : i32
    %c0_i32_2 = arith.constant 0 : i32
    return %c0_i32, %c0_i32_0, %c0_i32_1 : i32, i32, i32
  }
  func.func @transform_9(%arg0: i32, %arg1: memref<8xi32, #tpu.memory_space<smem>>) -> (i32, i32) {
    %c0_i32 = arith.constant 0 : i32
    %c0_i32_0 = arith.constant 0 : i32
    %c0_i32_1 = arith.constant 0 : i32
    return %c0_i32, %c0_i32_0 : i32, i32
  }
}

</mosaic_0001>

<llo_original>
// kernel: tpu_custom_call.1
$region0: #{tpu_custom_call.1}
  #allocation0 [shape = 'u32[]', space=smem, size = 0x4, offset = 0x4, fixed_abs, tag = 'smem constant byte address 0x4 - core index']
  #allocation1 [shape = 'u32[72,128]{1,0:T(1,128)}', space=vmem, size = 0x9000, scoped, tag = 'internal scratch']
  #allocation2 [shape = 'f32[8,128]{1,0:T(8,128)}', space=vmem, size = 0x1000, scoped, tag = 'scratch operand']
  #allocation3 [shape = 's32[8]{0}', space=sflag, size = 0x20, scoped, tag = 'scratch operand']
  #allocation4 [shape = 's32[1]{0}', space=sflag, size = 0x4, scoped, tag = 'scoped memory for tpu_custom_call.1']
  #allocation5 [shape = 'u8[512]{0}', space=smem, size = 0x200, scoped, tag = 'prefetched SMEM operand 0']
  #allocation19 [shape = 's32[]', space=sflag, size = 0x4, offset = 0, fixed_abs, tag = 'sflag constant byte address 0x0 - dummy sync flag']
  #allocation20 [shape = 's32[]', space=sflag, size = 0x4, offset = 0, fixed_abs, tag = 'sflag constant byte address 0x0 - dummy sync flag']
  #allocation21 [shape = 'u32[]', space=smem, size = 0x4, offset = 0x44, fixed_abs, tag = 'smem constant byte address 0x44 - assertion arg 0']
  #allocation22 [shape = 'u32[]', space=smem, size = 0x4, offset = 0x48, fixed_abs, tag = 'smem constant byte address 0x48 - assertion arg 1']
  #allocation23 [shape = 's32[]', space=sflag, size = 0x4, offset = 0, fixed_abs, tag = 'sflag constant byte address 0x0 - dummy sync flag']
  #allocation24 [shape = 's32[]', space=sflag, size = 0x4, offset = 0, fixed_abs, tag = 'sflag constant byte address 0x0 - dummy sync flag']
  #allocation25 [shape = 's32[]', space=sflag, size = 0x4, offset = 0, fixed_abs, tag = 'sflag constant byte address 0x0 - dummy sync flag']
  #allocation26 [shape = 's32[]', space=sflag, size = 0x4, offset = 0, fixed_abs, tag = 'sflag constant byte address 0x0 - dummy sync flag']
  #allocation27 [shape = 's32[]', space=sflag, size = 0x4, offset = 0, fixed_abs, tag = 'sflag constant byte address 0x0 - dummy sync flag']
  #allocation28 [shape = 's32[]', space=sflag, size = 0x4, offset = 0, fixed_abs, tag = 'sflag constant byte address 0x0 - dummy sync flag']
  #allocation29 [shape = 's32[]', space=sflag, size = 0x4, offset = 0, fixed_abs, tag = 'sflag constant byte address 0x0 - dummy sync flag']
  #allocation30 [shape = 's32[]', space=sflag, size = 0x4, offset = 0, fixed_abs, tag = 'sflag constant byte address 0x0 - dummy sync flag']
  #allocation31 [shape = 's32[]', space=sflag, size = 0x4, offset = 0, fixed_abs, tag = 'sflag constant byte address 0x0 - dummy sync flag']
  #allocation32 [shape = 's32[]', space=sflag, size = 0x4, offset = 0, fixed_abs, tag = 'sflag constant byte address 0x0 - dummy sync flag']
  #allocation33 [shape = 's32[]', space=sflag, size = 0x4, offset = 0, fixed_abs, tag = 'sflag constant byte address 0x0 - dummy sync flag']
  #allocation34 [shape = 's32[]', space=sflag, size = 0x4, offset = 0, fixed_abs, tag = 'sflag constant byte address 0x0 - dummy sync flag']
  #allocation35 [shape = 's32[]', space=sflag, size = 0x4, offset = 0, fixed_abs, tag = 'sflag constant byte address 0x0 - dummy sync flag']
  #allocation36 [shape = 's32[]', space=sflag, size = 0x4, offset = 0, fixed_abs, tag = 'sflag constant byte address 0x0 - dummy sync flag']
  %s0 = inlined_call_operand.hbm [shape: s32[8], index: 0, kind: input, shape index: {}]
  %s1 = inlined_call_operand.hbm [shape: f32[512,128], index: 1, kind: input, shape index: {}]
  %s2 = inlined_call_operand.hbm [shape: f32[2,8,128], index: 2, kind: input, shape index: {}]
  %s3 = inlined_call_operand.hbm [shape: f32[2,8,128], index: 3, kind: input, shape index: {}]
  %s4 = inlined_call_operand.hbm [shape: bf16[256,512], index: 4, kind: input, shape index: {}]
  %s5 = inlined_call_operand.vmem [shape: f32[1,512], index: 5, kind: input, shape index: {}]
  %s6 = inlined_call_operand.hbm [shape: bf16[256,512], index: 6, kind: input, shape index: {}]
  %s7 = inlined_call_operand.hbm [shape: f32[1,512], index: 7, kind: input, shape index: {}]
  %s8 = inlined_call_operand.hbm [shape: f32[2,8,128], index: 8, kind: output, shape index: {0}]
  %s9 = inlined_call_operand.hbm [shape: f32[2,8,128], index: 9, kind: output, shape index: {1}]
  %s10 = inlined_call_operand.hbm [shape: bf16[8,128], index: 10, kind: output, shape index: {2}]
  %11 = xla_tuple %s8, %s9, %s10
  %s12 = sld [smem:[#allocation0]]
  $region102: #{tpu_custom_call.1} parent=0
    _
  %s14 = ssub.s32 1, %s12
  %s15 = scalar_select 0, %s14, %s12
  %s17 = sshll.u32 %s0, 4
  %s18 = int_to_ptr.hbm [resolvable:$true] %s17
  %20 = dma.hbm_to_smem %s18, 16, [#allocation5], [#allocation4]
  %22 = dma.done [#allocation4], 16
  %23 = sfence
  $region1: #{tpu_custom_call.1} parent=0
    #allocation6 [shape = 'u8[8192]{0}', space=vmem, size = 0x2000, scoped, tag = 'input window, operand 2, single buffered']
    #allocation7 [shape = 's32[1]{0}', space=sflag, size = 0x4, scoped, tag = 'scoped memory for tpu_custom_call.1']
    #allocation8 [shape = 's32[1]{0}', space=sflag, size = 0x4, scoped, tag = 'scoped memory for tpu_custom_call.1']
    #allocation9 [shape = 'u8[8192]{0}', space=vmem, size = 0x2000, scoped, tag = 'input window, operand 3, single buffered']
    #allocation10 [shape = 's32[1]{0}', space=sflag, size = 0x4, scoped, tag = 'scoped memory for tpu_custom_call.1']
    #allocation11 [shape = 'u8[262144]{0}', space=vmem, size = 0x40000, scoped, tag = 'input window, operand 4, single buffered']
    #allocation12 [shape = 'u8[262144]{0}', space=vmem, size = 0x40000, scoped, tag = 'input window, operand 6, single buffered']
    #allocation13 [shape = 's32[1]{0}', space=sflag, size = 0x4, scoped, tag = 'scoped memory for tpu_custom_call.1']
    #allocation14 [shape = 'u8[2048]{0}', space=vmem, size = 0x800, scoped, tag = 'input window, operand 7, single buffered']
    #allocation15 [shape = 'u8[8192]{0}', space=vmem, size = 0x2000, scoped, tag = 'output window, operand 0, single buffered']
    #allocation16 [shape = 'u8[8192]{0}', space=vmem, size = 0x2000, scoped, tag = 'output window, operand 1, single buffered']
    #allocation17 [shape = 's32[1]{0}', space=sflag, size = 0x4, scoped, tag = 'scoped memory for tpu_custom_call.1']
    #allocation18 [shape = 'u8[2048]{0}', space=vmem, size = 0x800, scoped, tag = 'output window, operand 2, single buffered']
    %24 = vsyncpa [#allocation7], 0
    %25 = vsyncpa [#allocation10], 0
    %26 = vsyncpa [#allocation13], 0
    %27 = vsyncpa [#allocation8], 0
    %28 = vsyncpa [#allocation17], 0
    // Predicated region
    $region2: #{tpu_custom_call.1} parent=1 // pred_check
      _
    $region3: #{tpu_custom_call.1} parent=1 // pred_check_branch
      %30 = sbr.rel (0) target = $region5
    $region4: #{tpu_custom_call.1} parent=1 // pred_region
      %32 = vsyncadd [#allocation7], 0
      %s33 = sshll.u32 %s2, 4
      %s34 = int_to_ptr.hbm [resolvable:$true] %s33
      %s35 = sshll.u32 [#allocation6], 4
      %s36 = int_to_ptr.vmem [resolvable:$true] %s35
      %41 = dma.hbm_to_vmem [thread:$0]  %s34, 256, %s36, [#allocation7], 128, 128, 8
    $region5: #{tpu_custom_call.1} parent=1 // pred_fallthru
      _
    // Predicated region
    $region6: #{tpu_custom_call.1} parent=1 // pred_check
      _
    $region7: #{tpu_custom_call.1} parent=1 // pred_check_branch
      %43 = sbr.rel (0) target = $region9
    $region8: #{tpu_custom_call.1} parent=1 // pred_region
      %45 = vsyncadd [#allocation10], 0
      %s46 = sshll.u32 %s3, 4
      %s47 = int_to_ptr.hbm [resolvable:$true] %s46
      %s48 = sshll.u32 [#allocation9], 4
      %s49 = int_to_ptr.vmem [resolvable:$true] %s48
      %54 = dma.hbm_to_vmem [thread:$0]  %s47, 256, %s49, [#allocation10], 128, 128, 8
    $region9: #{tpu_custom_call.1} parent=1 // pred_fallthru
      _
    // Predicated region
    $region10: #{tpu_custom_call.1} parent=1 // pred_check
      _
    $region11: #{tpu_custom_call.1} parent=1 // pred_check_branch
      %56 = sbr.rel (0) target = $region13
    $region12: #{tpu_custom_call.1} parent=1 // pred_region
      %58 = vsyncadd [#allocation10], 0
      %s59 = sshll.u32 %s4, 4
      %s60 = int_to_ptr.hbm [resolvable:$true] %s59
      %s61 = sshll.u32 [#allocation11], 4
      %s62 = int_to_ptr.vmem [resolvable:$true] %s61
      %67 = dma.hbm_to_vmem [thread:$0]  %s60, 8192, %s62, [#allocation10], 256, 256, 16
    $region13: #{tpu_custom_call.1} parent=1 // pred_fallthru
      _
    // Predicated region
    $region14: #{tpu_custom_call.1} parent=1 // pred_check
      _
    $region15: #{tpu_custom_call.1} parent=1 // pred_check_branch
      %69 = sbr.rel (0) target = $region17
    $region16: #{tpu_custom_call.1} parent=1 // pred_region
      _
    $region17: #{tpu_custom_call.1} parent=1 // pred_fallthru
      _
    // Predicated region
    $region18: #{tpu_custom_call.1} parent=1 // pred_check
      _
    $region19: #{tpu_custom_call.1} parent=1 // pred_check_branch
      %71 = sbr.rel (0) target = $region21
    $region20: #{tpu_custom_call.1} parent=1 // pred_region
      %73 = vsyncadd [#allocation13], 0
      %s74 = sshll.u32 %s6, 4
      %s75 = int_to_ptr.hbm [resolvable:$true] %s74
      %s76 = sshll.u32 [#allocation12], 4
      %s77 = int_to_ptr.vmem [resolvable:$true] %s76
      %82 = dma.hbm_to_vmem [thread:$0]  %s75, 8192, %s77, [#allocation13], 256, 256, 16
    $region21: #{tpu_custom_call.1} parent=1 // pred_fallthru
      _
    // Predicated region
    $region22: #{tpu_custom_call.1} parent=1 // pred_check
      _
    $region23: #{tpu_custom_call.1} parent=1 // pred_check_branch
      %84 = sbr.rel (0) target = $region25
    $region24: #{tpu_custom_call.1} parent=1 // pred_region
      %86 = vsyncadd [#allocation13], 0
      %s88 = sshll.u32 %s7, 4
      %s89 = int_to_ptr.hbm [resolvable:$true] %s88
      %s90 = sshll.u32 [#allocation14], 4
      %s91 = int_to_ptr.vmem [resolvable:$true] %s90
      %93 = dma.hbm_to_vmem [thread:$0]  %s89, 64, %s91, [#allocation13]
    $region25: #{tpu_custom_call.1} parent=1 // pred_fallthru
      _
    // Predicated region
    $region26: #{tpu_custom_call.1} parent=1 // pred_check
      _
    $region27: #{tpu_custom_call.1} parent=1 // pred_check_branch
      %95 = sbr.rel (0) target = $region29
    $region28: #{tpu_custom_call.1} parent=1 // pred_region
      %97 = dma.done [#allocation7], 256
    $region29: #{tpu_custom_call.1} parent=1 // pred_fallthru
      _
    // Predicated region
    $region30: #{tpu_custom_call.1} parent=1 // pred_check
      _
    $region31: #{tpu_custom_call.1} parent=1 // pred_check_branch
      %99 = sbr.rel (0) target = $region33
    $region32: #{tpu_custom_call.1} parent=1 // pred_region
      %101 = dma.done [#allocation10], 256
    $region33: #{tpu_custom_call.1} parent=1 // pred_fallthru
      _
    // Predicated region
    $region34: #{tpu_custom_call.1} parent=1 // pred_check
      _
    $region35: #{tpu_custom_call.1} parent=1 // pred_check_branch
      %103 = sbr.rel (0) target = $region37
    $region36: #{tpu_custom_call.1} parent=1 // pred_region
      %105 = dma.done [#allocation10], 8192
    $region37: #{tpu_custom_call.1} parent=1 // pred_fallthru
      _
    // Predicated region
    $region38: #{tpu_custom_call.1} parent=1 // pred_check
      _
    $region39: #{tpu_custom_call.1} parent=1 // pred_check_branch
      %107 = sbr.rel (0) target = $region41
    $region40: #{tpu_custom_call.1} parent=1 // pred_region
      %109 = dma.done [#allocation13], 8192
    $region41: #{tpu_custom_call.1} parent=1 // pred_fallthru
      _
    // Predicated region
    $region42: #{tpu_custom_call.1} parent=1 // pred_check
      _
    $region43: #{tpu_custom_call.1} parent=1 // pred_check_branch
      %111 = sbr.rel (0) target = $region45
    $region44: #{tpu_custom_call.1} parent=1 // pred_region
      %113 = dma.done [#allocation13], 64
    $region45: #{tpu_custom_call.1} parent=1 // pred_fallthru
      _
    %s114 = sld [smem:[#allocation5]]
    %s115 = scalar_lea.hbm %s1, %s114
    // Predicated region
    $region46: #{tpu_custom_call.1} parent=1 // pred_check
      _
    $region47: #{tpu_custom_call.1} parent=1 // pred_check_branch
      %117 = sbr.rel target = $region49
    $region48: #{tpu_custom_call.1} parent=1 // pred_region
      %118 = sst [smem:[#allocation21]] [#allocation20]
      %119 = sst [smem:[#allocation22]] [#allocation19]
    $region49: #{tpu_custom_call.1} parent=1 // pred_fallthru
      _
    %121 = shalt.err (0)
    %s123 = sshll.u32 %s115, 4
    %s124 = int_to_ptr.hbm [resolvable:$true] %s123
    %s125 = sshll.u32 [#allocation2], 4
    %s126 = int_to_ptr.vmem [resolvable:$true] %s125
    %128 = dma.hbm_to_vmem [thread:$0]  %s124, 16, %s126, [#allocation3]
    %s129 = sld [smem:[#allocation5 + $0x1]]
    %s130 = scalar_lea.hbm %s1, %s129
    %s131 = scalar_lea.vmem [#allocation2], 1
    %s132 = scalar_lea.sflag [#allocation3], 1
    // Predicated region
    $region50: #{tpu_custom_call.1} parent=1 // pred_check
      _
    $region51: #{tpu_custom_call.1} parent=1 // pred_check_branch
      %134 = sbr.rel target = $region53
    $region52: #{tpu_custom_call.1} parent=1 // pred_region
      %135 = sst [smem:[#allocation21]] [#allocation24]
      %136 = sst [smem:[#allocation22]] [#allocation23]
    $region53: #{tpu_custom_call.1} parent=1 // pred_fallthru
      _
    %138 = shalt.err (0)
    %s140 = sshll.u32 %s130, 4
    %s141 = int_to_ptr.hbm [resolvable:$true] %s140
    %s142 = sshll.u32 %s131, 4
    %s143 = int_to_ptr.vmem [resolvable:$true] %s142
    %145 = dma.hbm_to_vmem [thread:$0]  %s141, 16, %s143, %s132
    %s146 = sld [smem:[#allocation5 + $0x2]]
    %s147 = scalar_lea.hbm %s1, %s146
    %s148 = scalar_lea.vmem [#allocation2], 2
    %s149 = scalar_lea.sflag [#allocation3], 2
    // Predicated region
    $region54: #{tpu_custom_call.1} parent=1 // pred_check
      _
    $region55: #{tpu_custom_call.1} parent=1 // pred_check_branch
      %151 = sbr.rel target = $region57
    $region56: #{tpu_custom_call.1} parent=1 // pred_region
      %152 = sst [smem:[#allocation21]] [#allocation26]
      %153 = sst [smem:[#allocation22]] [#allocation25]
    $region57: #{tpu_custom_call.1} parent=1 // pred_fallthru
      _
    %155 = shalt.err (0)
    %s157 = sshll.u32 %s147, 4
    %s158 = int_to_ptr.hbm [resolvable:$true] %s157
    %s159 = sshll.u32 %s148, 4
    %s160 = int_to_ptr.vmem [resolvable:$true] %s159
    %162 = dma.hbm_to_vmem [thread:$0]  %s158, 16, %s160, %s149
    %s163 = sld [smem:[#allocation5 + $0x3]]
    %s164 = scalar_lea.hbm %s1, %s163
    %s165 = scalar_lea.vmem [#allocation2], 3
    %s166 = scalar_lea.sflag [#allocation3], 3
    // Predicated region
    $region58: #{tpu_custom_call.1} parent=1 // pred_check
      _
    $region59: #{tpu_custom_call.1} parent=1 // pred_check_branch
      %168 = sbr.rel target = $region61
    $region60: #{tpu_custom_call.1} parent=1 // pred_region
      %169 = sst [smem:[#allocation21]] [#allocation28]
      %170 = sst [smem:[#allocation22]] [#allocation27]
    $region61: #{tpu_custom_call.1} parent=1 // pred_fallthru
      _
    %172 = shalt.err (0)
    %s174 = sshll.u32 %s164, 4
    %s175 = int_to_ptr.hbm [resolvable:$true] %s174
    %s176 = sshll.u32 %s165, 4
    %s177 = int_to_ptr.vmem [resolvable:$true] %s176
    %179 = dma.hbm_to_vmem [thread:$0]  %s175, 16, %s177, %s166
    %s180 = sld [smem:[#allocation5 + $0x4]]
    %s181 = scalar_lea.hbm %s1, %s180
    %s182 = scalar_lea.vmem [#allocation2], 4
    %s183 = scalar_lea.sflag [#allocation3], 4
    // Predicated region
    $region62: #{tpu_custom_call.1} parent=1 // pred_check
      _
    $region63: #{tpu_custom_call.1} parent=1 // pred_check_branch
      %185 = sbr.rel target = $region65
    $region64: #{tpu_custom_call.1} parent=1 // pred_region
      %186 = sst [smem:[#allocation21]] [#allocation30]
      %187 = sst [smem:[#allocation22]] [#allocation29]
    $region65: #{tpu_custom_call.1} parent=1 // pred_fallthru
      _
    %189 = shalt.err (0)
    %s191 = sshll.u32 %s181, 4
    %s192 = int_to_ptr.hbm [resolvable:$true] %s191
    %s193 = sshll.u32 %s182, 4
    %s194 = int_to_ptr.vmem [resolvable:$true] %s193
    %196 = dma.hbm_to_vmem [thread:$0]  %s192, 16, %s194, %s183
    %s197 = sld [smem:[#allocation5 + $0x5]]
    %s198 = scalar_lea.hbm %s1, %s197
    %s199 = scalar_lea.vmem [#allocation2], 5
    %s200 = scalar_lea.sflag [#allocation3], 5
    // Predicated region
    $region66: #{tpu_custom_call.1} parent=1 // pred_check
      _
    $region67: #{tpu_custom_call.1} parent=1 // pred_check_branch
      %202 = sbr.rel target = $region69
    $region68: #{tpu_custom_call.1} parent=1 // pred_region
      %203 = sst [smem:[#allocation21]] [#allocation32]
      %204 = sst [smem:[#allocation22]] [#allocation31]
    $region69: #{tpu_custom_call.1} parent=1 // pred_fallthru
      _
    %206 = shalt.err (0)
    %s208 = sshll.u32 %s198, 4
    %s209 = int_to_ptr.hbm [resolvable:$true] %s208
    %s210 = sshll.u32 %s199, 4
    %s211 = int_to_ptr.vmem [resolvable:$true] %s210
    %213 = dma.hbm_to_vmem [thread:$0]  %s209, 16, %s211, %s200
    %s214 = sld [smem:[#allocation5 + $0x6]]
    %s215 = scalar_lea.hbm %s1, %s214
    %s216 = scalar_lea.vmem [#allocation2], 6
    %s217 = scalar_lea.sflag [#allocation3], 6
    // Predicated region
    $region70: #{tpu_custom_call.1} parent=1 // pred_check
      _
    $region71: #{tpu_custom_call.1} parent=1 // pred_check_branch
      %219 = sbr.rel target = $region73
    $region72: #{tpu_custom_call.1} parent=1 // pred_region
      %220 = sst [smem:[#allocation21]] [#allocation34]
      %221 = sst [smem:[#allocation22]] [#allocation33]
    $region73: #{tpu_custom_call.1} parent=1 // pred_fallthru
      _
    %223 = shalt.err (0)
    %s225 = sshll.u32 %s215, 4
    %s226 = int_to_ptr.hbm [resolvable:$true] %s225
    %s227 = sshll.u32 %s216, 4
    %s228 = int_to_ptr.vmem [resolvable:$true] %s227
    %230 = dma.hbm_to_vmem [thread:$0]  %s226, 16, %s228, %s217
    %s231 = sld [smem:[#allocation5 + $0x7]]
    %s232 = scalar_lea.hbm %s1, %s231
    %s233 = scalar_lea.vmem [#allocation2], 7
    %s234 = scalar_lea.sflag [#allocation3], 7
    // Predicated region
    $region74: #{tpu_custom_call.1} parent=1 // pred_check
      _
    $region75: #{tpu_custom_call.1} parent=1 // pred_check_branch
      %236 = sbr.rel target = $region77
    $region76: #{tpu_custom_call.1} parent=1 // pred_region
      %237 = sst [smem:[#allocation21]] [#allocation36]
      %238 = sst [smem:[#allocation22]] [#allocation35]
    $region77: #{tpu_custom_call.1} parent=1 // pred_fallthru
      _
    %240 = shalt.err (0)
    %s242 = sshll.u32 %s232, 4
    %s243 = int_to_ptr.hbm [resolvable:$true] %s242
    %s244 = sshll.u32 %s233, 4
    %s245 = int_to_ptr.vmem [resolvable:$true] %s244
    %247 = dma.hbm_to_vmem [thread:$0]  %s243, 16, %s245, %s234
    %s248 = smul.u32 1, 1
    %s249 = sshll.u32 %s248, 4
    %250 = dma.done [#allocation3], %s249
    %s251 = sshll.u32 %s248, 4
    %252 = dma.done %s132, %s251
    %s253 = sshll.u32 %s248, 4
    %254 = dma.done %s149, %s253
    %s255 = sshll.u32 %s248, 4
    %256 = dma.done %s166, %s255
    %s257 = sshll.u32 %s248, 4
    %258 = dma.done %s183, %s257
    %s259 = sshll.u32 %s248, 4
    %260 = dma.done %s200, %s259
    %s261 = sshll.u32 %s248, 4
    %262 = dma.done %s217, %s261
    %s263 = sshll.u32 %s248, 4
    %264 = dma.done %s234, %s263
    %v265 = vld [vmem:[#allocation2] sm:$0xff]
    %v266 = vpack.c.bf16 %v265, %v265
    %v267 = vld [vmem:[#allocation6] sm:$0xff]
    %v268 = vpack.c.bf16 %v267, %v267
    %v269 = vld [vmem:[#allocation9] sm:$0xff]
    %v270 = vld [vmem:[#allocation11] sm:$0xff]
    %v271 = vld [vmem:[#allocation11 + $0x8] sm:$0xff]
    %v272 = vld [vmem:[#allocation11 + $0x10] sm:$0xff]
    %v273 = vld [vmem:[#allocation11 + $0x18] sm:$0xff]
    %v274 = vld [vmem:[#allocation11 + $0x20] sm:$0xff]
    %v275 = vld [vmem:[#allocation11 + $0x28] sm:$0xff]
    %v276 = vld [vmem:[#allocation11 + $0x30] sm:$0xff]
    %v277 = vld [vmem:[#allocation11 + $0x38] sm:$0xff]
    %v278 = vld [vmem:[#allocation11 + $0x40] sm:$0xff]
    %v279 = vld [vmem:[#allocation11 + $0x48] sm:$0xff]
    %v280 = vld [vmem:[#allocation11 + $0x50] sm:$0xff]
    %v281 = vld [vmem:[#allocation11 + $0x58] sm:$0xff]
    %v282 = vld [vmem:[#allocation11 + $0x60] sm:$0xff]
    %v283 = vld [vmem:[#allocation11 + $0x68] sm:$0xff]
    %v284 = vld [vmem:[#allocation11 + $0x70] sm:$0xff]
    %v285 = vld [vmem:[#allocation11 + $0x78] sm:$0xff]
    %v286 = vld [vmem:[#allocation11 + $0x80] sm:$0xff]
    %v287 = vld [vmem:[#allocation11 + $0x88] sm:$0xff]
    %v288 = vld [vmem:[#allocation11 + $0x90] sm:$0xff]
    %v289 = vld [vmem:[#allocation11 + $0x98] sm:$0xff]
    %v290 = vld [vmem:[#allocation11 + $0xa0] sm:$0xff]
    %v291 = vld [vmem:[#allocation11 + $0xa8] sm:$0xff]
    %v292 = vld [vmem:[#allocation11 + $0xb0] sm:$0xff]
    %v293 = vld [vmem:[#allocation11 + $0xb8] sm:$0xff]
    %v294 = vld [vmem:[#allocation11 + $0xc0] sm:$0xff]
    %v295 = vld [vmem:[#allocation11 + $0xc8] sm:$0xff]
    %v296 = vld [vmem:[#allocation11 + $0xd0] sm:$0xff]
    %v297 = vld [vmem:[#allocation11 + $0xd8] sm:$0xff]
    %v298 = vld [vmem:[#allocation11 + $0xe0] sm:$0xff]
    %v299 = vld [vmem:[#allocation11 + $0xe8] sm:$0xff]
    %v300 = vld [vmem:[#allocation11 + $0xf0] sm:$0xff]
    %v301 = vld [vmem:[#allocation11 + $0xf8] sm:$0xff]
    %v302 = vld [vmem:[#allocation11 + $0x100] sm:$0xff]
    %v303 = vld [vmem:[#allocation11 + $0x108] sm:$0xff]
    %v304 = vld [vmem:[#allocation11 + $0x110] sm:$0xff]
    %v305 = vld [vmem:[#allocation11 + $0x118] sm:$0xff]
    %v306 = vld [vmem:[#allocation11 + $0x120] sm:$0xff]
    %v307 = vld [vmem:[#allocation11 + $0x128] sm:$0xff]
    %v308 = vld [vmem:[#allocation11 + $0x130] sm:$0xff]
    %v309 = vld [vmem:[#allocation11 + $0x138] sm:$0xff]
    %v310 = vld [vmem:[#allocation11 + $0x140] sm:$0xff]
    %v311 = vld [vmem:[#allocation11 + $0x148] sm:$0xff]
    %v312 = vld [vmem:[#allocation11 + $0x150] sm:$0xff]
    %v313 = vld [vmem:[#allocation11 + $0x158] sm:$0xff]
    %v314 = vld [vmem:[#allocation11 + $0x160] sm:$0xff]
    %v315 = vld [vmem:[#allocation11 + $0x168] sm:$0xff]
    %v316 = vld [vmem:[#allocation11 + $0x170] sm:$0xff]
    %v317 = vld [vmem:[#allocation11 + $0x178] sm:$0xff]
    %v318 = vld [vmem:[#allocation11 + $0x180] sm:$0xff]
    %v319 = vld [vmem:[#allocation11 + $0x188] sm:$0xff]
    %v320 = vld [vmem:[#allocation11 + $0x190] sm:$0xff]
    %v321 = vld [vmem:[#allocation11 + $0x198] sm:$0xff]
    %v322 = vld [vmem:[#allocation11 + $0x1a0] sm:$0xff]
    %v323 = vld [vmem:[#allocation11 + $0x1a8] sm:$0xff]
    %v324 = vld [vmem:[#allocation11 + $0x1b0] sm:$0xff]
    %v325 = vld [vmem:[#allocation11 + $0x1b8] sm:$0xff]
    %v326 = vld [vmem:[#allocation11 + $0x1c0] sm:$0xff]
    %v327 = vld [vmem:[#allocation11 + $0x1c8] sm:$0xff]
    %v328 = vld [vmem:[#allocation11 + $0x1d0] sm:$0xff]
    %v329 = vld [vmem:[#allocation11 + $0x1d8] sm:$0xff]
    %v330 = vld [vmem:[#allocation11 + $0x1e0] sm:$0xff]
    %v331 = vld [vmem:[#allocation11 + $0x1e8] sm:$0xff]
    %v332 = vld [vmem:[#allocation11 + $0x1f0] sm:$0xff]
    %v333 = vld [vmem:[#allocation11 + $0x1f8] sm:$0xff]
    %v334 = vld [vmem:[%s5] sm:$0xf]
    %v336 = vperm.slane %v334, 0
    %v337 = vperm.slane %v334, 1
    %v338 = vperm.slane %v334, 2
    %v339 = vperm.slane %v334, 3
    %v408 = vunpack.c.l.b16 %v270
    %v409 = vunpack.c.h.b16 %v270
    %v410 = vunpack.c.l.b16 %v271
    %v411 = vunpack.c.h.b16 %v271
    %v412 = vunpack.c.l.b16 %v272
    %v413 = vunpack.c.h.b16 %v272
    %v414 = vunpack.c.l.b16 %v273
    %v415 = vunpack.c.h.b16 %v273
    %v416 = vunpack.c.l.b16 %v274
    %v417 = vunpack.c.h.b16 %v274
    %v418 = vunpack.c.l.b16 %v275
    %v419 = vunpack.c.h.b16 %v275
    %v420 = vunpack.c.l.b16 %v276
    %v421 = vunpack.c.h.b16 %v276
    %v422 = vunpack.c.l.b16 %v277
    %v423 = vunpack.c.h.b16 %v277
    %v424 = vunpack.c.l.b16 %v278
    %v425 = vunpack.c.h.b16 %v278
    %v426 = vunpack.c.l.b16 %v279
    %v427 = vunpack.c.h.b16 %v279
    %v428 = vunpack.c.l.b16 %v280
    %v429 = vunpack.c.h.b16 %v280
    %v430 = vunpack.c.l.b16 %v281
    %v431 = vunpack.c.h.b16 %v281
    %v432 = vunpack.c.l.b16 %v282
    %v433 = vunpack.c.h.b16 %v282
    %v434 = vunpack.c.l.b16 %v283
    %v435 = vunpack.c.h.b16 %v283
    %v436 = vunpack.c.l.b16 %v284
    %v437 = vunpack.c.h.b16 %v284
    %v438 = vunpack.c.l.b16 %v285
    %v439 = vunpack.c.h.b16 %v285
    %v440 = vunpack.c.l.b16 %v286
    %v441 = vunpack.c.h.b16 %v286
    %v442 = vunpack.c.l.b16 %v287
    %v443 = vunpack.c.h.b16 %v287
    %v444 = vunpack.c.l.b16 %v288
    %v445 = vunpack.c.h.b16 %v288
    %v446 = vunpack.c.l.b16 %v289
    %v447 = vunpack.c.h.b16 %v289
    %v448 = vunpack.c.l.b16 %v290
    %v449 = vunpack.c.h.b16 %v290
    %v450 = vunpack.c.l.b16 %v291
    %v451 = vunpack.c.h.b16 %v291
    %v452 = vunpack.c.l.b16 %v292
    %v453 = vunpack.c.h.b16 %v292
    %v454 = vunpack.c.l.b16 %v293
    %v455 = vunpack.c.h.b16 %v293
    %v456 = vunpack.c.l.b16 %v294
    %v457 = vunpack.c.h.b16 %v294
    %v458 = vunpack.c.l.b16 %v295
    %v459 = vunpack.c.h.b16 %v295
    %v460 = vunpack.c.l.b16 %v296
    %v461 = vunpack.c.h.b16 %v296
    %v462 = vunpack.c.l.b16 %v297
    %v463 = vunpack.c.h.b16 %v297
    %v464 = vunpack.c.l.b16 %v298
    %v465 = vunpack.c.h.b16 %v298
    %v466 = vunpack.c.l.b16 %v299
    %v467 = vunpack.c.h.b16 %v299
    %v468 = vunpack.c.l.b16 %v300
    %v469 = vunpack.c.h.b16 %v300
    %v470 = vunpack.c.l.b16 %v301
    %v471 = vunpack.c.h.b16 %v301
    %v472 = vunpack.c.l.b16 %v302
    %v473 = vunpack.c.h.b16 %v302
    %v474 = vunpack.c.l.b16 %v303
    %v475 = vunpack.c.h.b16 %v303
    %v476 = vunpack.c.l.b16 %v304
    %v477 = vunpack.c.h.b16 %v304
    %v478 = vunpack.c.l.b16 %v305
    %v479 = vunpack.c.h.b16 %v305
    %v480 = vunpack.c.l.b16 %v306
    %v481 = vunpack.c.h.b16 %v306
    %v482 = vunpack.c.l.b16 %v307
    %v483 = vunpack.c.h.b16 %v307
    %v484 = vunpack.c.l.b16 %v308
    %v485 = vunpack.c.h.b16 %v308
    %v486 = vunpack.c.l.b16 %v309
    %v487 = vunpack.c.h.b16 %v309
    %v488 = vunpack.c.l.b16 %v310
    %v489 = vunpack.c.h.b16 %v310
    %v490 = vunpack.c.l.b16 %v311
    %v491 = vunpack.c.h.b16 %v311
    %v492 = vunpack.c.l.b16 %v312
    %v493 = vunpack.c.h.b16 %v312
    %v494 = vunpack.c.l.b16 %v313
    %v495 = vunpack.c.h.b16 %v313
    %v496 = vunpack.c.l.b16 %v314
    %v497 = vunpack.c.h.b16 %v314
    %v498 = vunpack.c.l.b16 %v315
    %v499 = vunpack.c.h.b16 %v315
    %v500 = vunpack.c.l.b16 %v316
    %v501 = vunpack.c.h.b16 %v316
    %v502 = vunpack.c.l.b16 %v317
    %v503 = vunpack.c.h.b16 %v317
    %v504 = vunpack.c.l.b16 %v318
    %v505 = vunpack.c.h.b16 %v318
    %v506 = vunpack.c.l.b16 %v319
    %v507 = vunpack.c.h.b16 %v319
    %v508 = vunpack.c.l.b16 %v320
    %v509 = vunpack.c.h.b16 %v320
    %v510 = vunpack.c.l.b16 %v321
    %v511 = vunpack.c.h.b16 %v321
    %v512 = vunpack.c.l.b16 %v322
    %v513 = vunpack.c.h.b16 %v322
    %v514 = vunpack.c.l.b16 %v323
    %v515 = vunpack.c.h.b16 %v323
    %v516 = vunpack.c.l.b16 %v324
    %v517 = vunpack.c.h.b16 %v324
    %v518 = vunpack.c.l.b16 %v325
    %v519 = vunpack.c.h.b16 %v325
    %v520 = vunpack.c.l.b16 %v326
    %v521 = vunpack.c.h.b16 %v326
    %v522 = vunpack.c.l.b16 %v327
    %v523 = vunpack.c.h.b16 %v327
    %v524 = vunpack.c.l.b16 %v328
    %v525 = vunpack.c.h.b16 %v328
    %v526 = vunpack.c.l.b16 %v329
    %v527 = vunpack.c.h.b16 %v329
    %v528 = vunpack.c.l.b16 %v330
    %v529 = vunpack.c.h.b16 %v330
    %v530 = vunpack.c.l.b16 %v331
    %v531 = vunpack.c.h.b16 %v331
    %v532 = vunpack.c.l.b16 %v332
    %v533 = vunpack.c.h.b16 %v332
    %v534 = vunpack.c.l.b16 %v333
    %v535 = vunpack.c.h.b16 %v333
    %v536 = vpack.c.b16 %v412, %v408
    %v537 = vpack.c.b16 %v413, %v409
    %v538 = vpack.c.b16 %v414, %v410
    %v539 = vpack.c.b16 %v415, %v411
    %v540 = vpack.c.b16 %v420, %v416
    %v541 = vpack.c.b16 %v421, %v417
    %v542 = vpack.c.b16 %v422, %v418
    %v543 = vpack.c.b16 %v423, %v419
    %v544 = vpack.c.b16 %v428, %v424
    %v545 = vpack.c.b16 %v429, %v425
    %v546 = vpack.c.b16 %v430, %v426
    %v547 = vpack.c.b16 %v431, %v427
    %v548 = vpack.c.b16 %v436, %v432
    %v549 = vpack.c.b16 %v437, %v433
    %v550 = vpack.c.b16 %v438, %v434
    %v551 = vpack.c.b16 %v439, %v435
    %v552 = vpack.c.b16 %v444, %v440
    %v553 = vpack.c.b16 %v445, %v441
    %v554 = vpack.c.b16 %v446, %v442
    %v555 = vpack.c.b16 %v447, %v443
    %v556 = vpack.c.b16 %v452, %v448
    %v557 = vpack.c.b16 %v453, %v449
    %v558 = vpack.c.b16 %v454, %v450
    %v559 = vpack.c.b16 %v455, %v451
    %v560 = vpack.c.b16 %v460, %v456
    %v561 = vpack.c.b16 %v461, %v457
    %v562 = vpack.c.b16 %v462, %v458
    %v563 = vpack.c.b16 %v463, %v459
    %v564 = vpack.c.b16 %v468, %v464
    %v565 = vpack.c.b16 %v469, %v465
    %v566 = vpack.c.b16 %v470, %v466
    %v567 = vpack.c.b16 %v471, %v467
    %v568 = vpack.c.b16 %v476, %v472
    %v569 = vpack.c.b16 %v477, %v473
    %v570 = vpack.c.b16 %v478, %v474
    %v571 = vpack.c.b16 %v479, %v475
    %v572 = vpack.c.b16 %v484, %v480
    %v573 = vpack.c.b16 %v485, %v481
    %v574 = vpack.c.b16 %v486, %v482
    %v575 = vpack.c.b16 %v487, %v483
    %v576 = vpack.c.b16 %v492, %v488
    %v577 = vpack.c.b16 %v493, %v489
    %v578 = vpack.c.b16 %v494, %v490
    %v579 = vpack.c.b16 %v495, %v491
    %v580 = vpack.c.b16 %v500, %v496
    %v581 = vpack.c.b16 %v501, %v497
    %v582 = vpack.c.b16 %v502, %v498
    %v583 = vpack.c.b16 %v503, %v499
    %v584 = vpack.c.b16 %v508, %v504
    %v585 = vpack.c.b16 %v509, %v505
    %v586 = vpack.c.b16 %v510, %v506
    %v587 = vpack.c.b16 %v511, %v507
    %v588 = vpack.c.b16 %v516, %v512
    %v589 = vpack.c.b16 %v517, %v513
    %v590 = vpack.c.b16 %v518, %v514
    %v591 = vpack.c.b16 %v519, %v515
    %v592 = vpack.c.b16 %v524, %v520
    %v593 = vpack.c.b16 %v525, %v521
    %v594 = vpack.c.b16 %v526, %v522
    %v595 = vpack.c.b16 %v527, %v523
    %v596 = vpack.c.b16 %v532, %v528
    %v597 = vpack.c.b16 %v533, %v529
    %v598 = vpack.c.b16 %v534, %v530
    %v599 = vpack.c.b16 %v535, %v531
    %664 = vmatpush.bf16.msra.mxu0 %v564
    %665 = vmatpush.bf16.msra.mxu0 %v560
    %666 = vmatpush.bf16.msra.mxu0 %v556
    %667 = vmatpush.bf16.msra.mxu0 %v552
    %668 = vmatpush.bf16.msra.mxu0 %v548
    %669 = vmatpush.bf16.msra.mxu0 %v544
    %670 = vmatpush.bf16.msra.mxu0 %v540
    %671 = vmatpush.bf16.msra.mxu0 %v536
    %672 = vmatmul.bf16.gmra.mxu0 %v266
    %v673 = vpop.f32.mrf.mxu0
    %v674 = vadd.f32 %v336, %v673
    %v675 = vpop.f32.mrf.mxu0
    %676 = vdwg.mxu0
    %677 = vmatpush.bf16.msra.mxu0 %v596
    %678 = vmatpush.bf16.msra.mxu0 %v592
    %679 = vmatpush.bf16.msra.mxu0 %v588
    %680 = vmatpush.bf16.msra.mxu0 %v584
    %681 = vmatpush.bf16.msra.mxu0 %v580
    %682 = vmatpush.bf16.msra.mxu0 %v576
    %683 = vmatpush.bf16.msra.mxu0 %v572
    %684 = vmatpush.bf16.msra.mxu0 %v568
    %685 = vmatmul.bf16.gmra.mxu0 %v268
    %v686 = vpop.f32.mrf.mxu0
    %v687 = vadd.f32 %v674, %v686
    %v688 = vpop.f32.mrf.mxu0
    %689 = vdwg.mxu0
    %690 = vmatpush.bf16.msra.mxu0 %v565
    %691 = vmatpush.bf16.msra.mxu0 %v561
    %692 = vmatpush.bf16.msra.mxu0 %v557
    %693 = vmatpush.bf16.msra.mxu0 %v553
    %694 = vmatpush.bf16.msra.mxu0 %v549
    %695 = vmatpush.bf16.msra.mxu0 %v545
    %696 = vmatpush.bf16.msra.mxu0 %v541
    %697 = vmatpush.bf16.msra.mxu0 %v537
    %698 = vmatmul.bf16.gmra.mxu0 %v266
    %v699 = vpop.f32.mrf.mxu0
    %v700 = vadd.f32 %v337, %v699
    %v701 = vpop.f32.mrf.mxu0
    %702 = vdwg.mxu0
    %703 = vmatpush.bf16.msra.mxu0 %v597
    %704 = vmatpush.bf16.msra.mxu0 %v593
    %705 = vmatpush.bf16.msra.mxu0 %v589
    %706 = vmatpush.bf16.msra.mxu0 %v585
    %707 = vmatpush.bf16.msra.mxu0 %v581
    %708 = vmatpush.bf16.msra.mxu0 %v577
    %709 = vmatpush.bf16.msra.mxu0 %v573
    %710 = vmatpush.bf16.msra.mxu0 %v569
    %711 = vmatmul.bf16.gmra.mxu0 %v268
    %v712 = vpop.f32.mrf.mxu0
    %v713 = vadd.f32 %v700, %v712
    %v714 = vpop.f32.mrf.mxu0
    %715 = vdwg.mxu0
    %716 = vmatpush.bf16.msra.mxu0 %v566
    %717 = vmatpush.bf16.msra.mxu0 %v562
    %718 = vmatpush.bf16.msra.mxu0 %v558
    %719 = vmatpush.bf16.msra.mxu0 %v554
    %720 = vmatpush.bf16.msra.mxu0 %v550
    %721 = vmatpush.bf16.msra.mxu0 %v546
    %722 = vmatpush.bf16.msra.mxu0 %v542
    %723 = vmatpush.bf16.msra.mxu0 %v538
    %724 = vmatmul.bf16.gmra.mxu0 %v266
    %v725 = vpop.f32.mrf.mxu0
    %v726 = vadd.f32 %v338, %v725
    %v727 = vpop.f32.mrf.mxu0
    %728 = vdwg.mxu0
    %729 = vmatpush.bf16.msra.mxu0 %v598
    %730 = vmatpush.bf16.msra.mxu0 %v594
    %731 = vmatpush.bf16.msra.mxu0 %v590
    %732 = vmatpush.bf16.msra.mxu0 %v586
    %733 = vmatpush.bf16.msra.mxu0 %v582
    %734 = vmatpush.bf16.msra.mxu0 %v578
    %735 = vmatpush.bf16.msra.mxu0 %v574
    %736 = vmatpush.bf16.msra.mxu0 %v570
    %737 = vmatmul.bf16.gmra.mxu0 %v268
    %v738 = vpop.f32.mrf.mxu0
    %v739 = vadd.f32 %v726, %v738
    %v740 = vpop.f32.mrf.mxu0
    %741 = vdwg.mxu0
    %742 = vmatpush.bf16.msra.mxu0 %v567
    %743 = vmatpush.bf16.msra.mxu0 %v563
    %744 = vmatpush.bf16.msra.mxu0 %v559
    %745 = vmatpush.bf16.msra.mxu0 %v555
    %746 = vmatpush.bf16.msra.mxu0 %v551
    %747 = vmatpush.bf16.msra.mxu0 %v547
    %748 = vmatpush.bf16.msra.mxu0 %v543
    %749 = vmatpush.bf16.msra.mxu0 %v539
    %750 = vmatmul.bf16.gmra.mxu0 %v266
    %v751 = vpop.f32.mrf.mxu0
    %v752 = vadd.f32 %v339, %v751
    %v753 = vpop.f32.mrf.mxu0
    %754 = vdwg.mxu0
    %755 = vmatpush.bf16.msra.mxu0 %v599
    %756 = vmatpush.bf16.msra.mxu0 %v595
    %757 = vmatpush.bf16.msra.mxu0 %v591
    %758 = vmatpush.bf16.msra.mxu0 %v587
    %759 = vmatpush.bf16.msra.mxu0 %v583
    %760 = vmatpush.bf16.msra.mxu0 %v579
    %761 = vmatpush.bf16.msra.mxu0 %v575
    %762 = vmatpush.bf16.msra.mxu0 %v571
    %763 = vmatmul.bf16.gmra.mxu0 %v268
    %v764 = vpop.f32.mrf.mxu0
    %v765 = vadd.f32 %v752, %v764
    %v766 = vpop.f32.mrf.mxu0
    %767 = vdwg.mxu0
    %v768 = vxor.u32 %v687, 2147483648
    %v769 = vxor.u32 %v713, 2147483648
    %v770 = vxor.u32 %v739, 2147483648
    %v771 = vmul.f32 %v768, 1.442695
    %v772 = vpow.pop %v771
    %v773 = vmul.f32 %v769, 1.442695
    %v774 = vpow.pop %v773
    %v775 = vmul.f32 %v770, 1.442695
    %v776 = vpow.pop %v775
    %v777 = vadd.f32 %v772, 1.0
    %v778 = vadd.f32 %v774, 1.0
    %v779 = vadd.f32 %v776, 1.0
    %v780 = vrcp.pop %v777
    %v781 = vmul.f32 %v777, %v780
    %v782 = vsub.f32 1.0, %v781
    %v783 = vmul.f32 %v780, %v782
    %v784 = vadd.f32 %v780, %v783
    %vm785 = vweird.f32 %v777
    %vm786 = vweird.f32 %v780
    %vm787 = vmor %vm785, %vm786
    %v788 = vsel %vm787, %v780, %v784
    %v789 = vand.u32 2147483647, %v777
    %vm790 = vcmp.eq.f32.partialorder %v789, 8.507059e+37
    %v791 = vand.u32 %v777, 2147483648
    %v792 = vor.u32 1.1754944e-38, %v791
    %v793 = vsel %vm790, %v792, %v788
    %v794 = vmul.f32 1.0, %v793
    %v795 = vrcp.pop %v778
    %v796 = vmul.f32 %v778, %v795
    %v797 = vsub.f32 1.0, %v796
    %v798 = vmul.f32 %v795, %v797
    %v799 = vadd.f32 %v795, %v798
    %vm800 = vweird.f32 %v778
    %vm801 = vweird.f32 %v795
    %vm802 = vmor %vm800, %vm801
    %v803 = vsel %vm802, %v795, %v799
    %v804 = vand.u32 2147483647, %v778
    %vm805 = vcmp.eq.f32.partialorder %v804, 8.507059e+37
    %v806 = vand.u32 %v778, 2147483648
    %v807 = vor.u32 1.1754944e-38, %v806
    %v808 = vsel %vm805, %v807, %v803
    %v809 = vmul.f32 1.0, %v808
    %v810 = vrcp.pop %v779
    %v811 = vmul.f32 %v779, %v810
    %v812 = vsub.f32 1.0, %v811
    %v813 = vmul.f32 %v810, %v812
    %v814 = vadd.f32 %v810, %v813
    %vm815 = vweird.f32 %v779
    %vm816 = vweird.f32 %v810
    %vm817 = vmor %vm815, %vm816
    %v818 = vsel %vm817, %v810, %v814
    %v819 = vand.u32 2147483647, %v779
    %vm820 = vcmp.eq.f32.partialorder %v819, 8.507059e+37
    %v821 = vand.u32 %v779, 2147483648
    %v822 = vor.u32 1.1754944e-38, %v821
    %v823 = vsel %vm820, %v822, %v818
    %v824 = vmul.f32 1.0, %v823
    %v825 = vtanh.pop %v765
    %v826 = vmul.f32 %v809, %v269
    %v827 = vmul.f32 %v794, %v825
    %v828 = vadd.f32 %v826, %v827
    %v829 = vtanh.pop %v828
    %v830 = vmul.f32 %v824, %v829
    %v831 = vpack.c.bf16 %v830, %v830
    %s832 = scalar_lea.vmem [#allocation6], 8
    %v833 = vld [vmem:[%s832] sm:$0xff]
    %v834 = vpack.c.bf16 %v833, %v833
    %s835 = scalar_lea.vmem [#allocation9], 8
    %v836 = vld [vmem:[%s835] sm:$0xff]
    %v837 = vld [vmem:[#allocation12] sm:$0xff]
    %v838 = vld [vmem:[#allocation12 + $0x8] sm:$0xff]
    %v839 = vld [vmem:[#allocation12 + $0x10] sm:$0xff]
    %v840 = vld [vmem:[#allocation12 + $0x18] sm:$0xff]
    %v841 = vld [vmem:[#allocation12 + $0x20] sm:$0xff]
    %v842 = vld [vmem:[#allocation12 + $0x28] sm:$0xff]
    %v843 = vld [vmem:[#allocation12 + $0x30] sm:$0xff]
    %v844 = vld [vmem:[#allocation12 + $0x38] sm:$0xff]
    %v845 = vld [vmem:[#allocation12 + $0x40] sm:$0xff]
    %v846 = vld [vmem:[#allocation12 + $0x48] sm:$0xff]
    %v847 = vld [vmem:[#allocation12 + $0x50] sm:$0xff]
    %v848 = vld [vmem:[#allocation12 + $0x58] sm:$0xff]
    %v849 = vld [vmem:[#allocation12 + $0x60] sm:$0xff]
    %v850 = vld [vmem:[#allocation12 + $0x68] sm:$0xff]
    %v851 = vld [vmem:[#allocation12 + $0x70] sm:$0xff]
    %v852 = vld [vmem:[#allocation12 + $0x78] sm:$0xff]
    %v853 = vld [vmem:[#allocation12 + $0x80] sm:$0xff]
    %v854 = vld [vmem:[#allocation12 + $0x88] sm:$0xff]
    %v855 = vld [vmem:[#allocation12 + $0x90] sm:$0xff]
    %v856 = vld [vmem:[#allocation12 + $0x98] sm:$0xff]
    %v857 = vld [vmem:[#allocation12 + $0xa0] sm:$0xff]
    %v858 = vld [vmem:[#allocation12 + $0xa8] sm:$0xff]
    %v859 = vld [vmem:[#allocation12 + $0xb0] sm:$0xff]
    %v860 = vld [vmem:[#allocation12 + $0xb8] sm:$0xff]
    %v861 = vld [vmem:[#allocation12 + $0xc0] sm:$0xff]
    %v862 = vld [vmem:[#allocation12 + $0xc8] sm:$0xff]
    %v863 = vld [vmem:[#allocation12 + $0xd0] sm:$0xff]
    %v864 = vld [vmem:[#allocation12 + $0xd8] sm:$0xff]
    %v865 = vld [vmem:[#allocation12 + $0xe0] sm:$0xff]
    %v866 = vld [vmem:[#allocation12 + $0xe8] sm:$0xff]
    %v867 = vld [vmem:[#allocation12 + $0xf0] sm:$0xff]
    %v868 = vld [vmem:[#allocation12 + $0xf8] sm:$0xff]
    %v869 = vld [vmem:[#allocation12 + $0x100] sm:$0xff]
    %v870 = vld [vmem:[#allocation12 + $0x108] sm:$0xff]
    %v871 = vld [vmem:[#allocation12 + $0x110] sm:$0xff]
    %v872 = vld [vmem:[#allocation12 + $0x118] sm:$0xff]
    %v873 = vld [vmem:[#allocation12 + $0x120] sm:$0xff]
    %v874 = vld [vmem:[#allocation12 + $0x128] sm:$0xff]
    %v875 = vld [vmem:[#allocation12 + $0x130] sm:$0xff]
    %v876 = vld [vmem:[#allocation12 + $0x138] sm:$0xff]
    %v877 = vld [vmem:[#allocation12 + $0x140] sm:$0xff]
    %v878 = vld [vmem:[#allocation12 + $0x148] sm:$0xff]
    %v879 = vld [vmem:[#allocation12 + $0x150] sm:$0xff]
    %v880 = vld [vmem:[#allocation12 + $0x158] sm:$0xff]
    %v881 = vld [vmem:[#allocation12 + $0x160] sm:$0xff]
    %v882 = vld [vmem:[#allocation12 + $0x168] sm:$0xff]
    %v883 = vld [vmem:[#allocation12 + $0x170] sm:$0xff]
    %v884 = vld [vmem:[#allocation12 + $0x178] sm:$0xff]
    %v885 = vld [vmem:[#allocation12 + $0x180] sm:$0xff]
    %v886 = vld [vmem:[#allocation12 + $0x188] sm:$0xff]
    %v887 = vld [vmem:[#allocation12 + $0x190] sm:$0xff]
    %v888 = vld [vmem:[#allocation12 + $0x198] sm:$0xff]
    %v889 = vld [vmem:[#allocation12 + $0x1a0] sm:$0xff]
    %v890 = vld [vmem:[#allocation12 + $0x1a8] sm:$0xff]
    %v891 = vld [vmem:[#allocation12 + $0x1b0] sm:$0xff]
    %v892 = vld [vmem:[#allocation12 + $0x1b8] sm:$0xff]
    %v893 = vld [vmem:[#allocation12 + $0x1c0] sm:$0xff]
    %v894 = vld [vmem:[#allocation12 + $0x1c8] sm:$0xff]
    %v895 = vld [vmem:[#allocation12 + $0x1d0] sm:$0xff]
    %v896 = vld [vmem:[#allocation12 + $0x1d8] sm:$0xff]
    %v897 = vld [vmem:[#allocation12 + $0x1e0] sm:$0xff]
    %v898 = vld [vmem:[#allocation12 + $0x1e8] sm:$0xff]
    %v899 = vld [vmem:[#allocation12 + $0x1f0] sm:$0xff]
    %v900 = vld [vmem:[#allocation12 + $0x1f8] sm:$0xff]
    %v901 = vld [vmem:[#allocation14] sm:$0xf]
    %v903 = vperm.slane %v901, 0
    %v904 = vperm.slane %v901, 1
    %v905 = vperm.slane %v901, 2
    %v906 = vperm.slane %v901, 3
    %v975 = vunpack.c.l.b16 %v837
    %v976 = vunpack.c.h.b16 %v837
    %v977 = vunpack.c.l.b16 %v838
    %v978 = vunpack.c.h.b16 %v838
    %v979 = vunpack.c.l.b16 %v839
    %v980 = vunpack.c.h.b16 %v839
    %v981 = vunpack.c.l.b16 %v840
    %v982 = vunpack.c.h.b16 %v840
    %v983 = vunpack.c.l.b16 %v841
    %v984 = vunpack.c.h.b16 %v841
    %v985 = vunpack.c.l.b16 %v842
    %v986 = vunpack.c.h.b16 %v842
    %v987 = vunpack.c.l.b16 %v843
    %v988 = vunpack.c.h.b16 %v843
    %v989 = vunpack.c.l.b16 %v844
    %v990 = vunpack.c.h.b16 %v844
    %v991 = vunpack.c.l.b16 %v845
    %v992 = vunpack.c.h.b16 %v845
    %v993 = vunpack.c.l.b16 %v846
    %v994 = vunpack.c.h.b16 %v846
    %v995 = vunpack.c.l.b16 %v847
    %v996 = vunpack.c.h.b16 %v847
    %v997 = vunpack.c.l.b16 %v848
    %v998 = vunpack.c.h.b16 %v848
    %v999 = vunpack.c.l.b16 %v849
    %v1000 = vunpack.c.h.b16 %v849
    %v1001 = vunpack.c.l.b16 %v850
    %v1002 = vunpack.c.h.b16 %v850
    %v1003 = vunpack.c.l.b16 %v851
    %v1004 = vunpack.c.h.b16 %v851
    %v1005 = vunpack.c.l.b16 %v852
    %v1006 = vunpack.c.h.b16 %v852
    %v1007 = vunpack.c.l.b16 %v853
    %v1008 = vunpack.c.h.b16 %v853
    %v1009 = vunpack.c.l.b16 %v854
    %v1010 = vunpack.c.h.b16 %v854
    %v1011 = vunpack.c.l.b16 %v855
    %v1012 = vunpack.c.h.b16 %v855
    %v1013 = vunpack.c.l.b16 %v856
    %v1014 = vunpack.c.h.b16 %v856
    %v1015 = vunpack.c.l.b16 %v857
    %v1016 = vunpack.c.h.b16 %v857
    %v1017 = vunpack.c.l.b16 %v858
    %v1018 = vunpack.c.h.b16 %v858
    %v1019 = vunpack.c.l.b16 %v859
    %v1020 = vunpack.c.h.b16 %v859
    %v1021 = vunpack.c.l.b16 %v860
    %v1022 = vunpack.c.h.b16 %v860
    %v1023 = vunpack.c.l.b16 %v861
    %v1024 = vunpack.c.h.b16 %v861
    %v1025 = vunpack.c.l.b16 %v862
    %v1026 = vunpack.c.h.b16 %v862
    %v1027 = vunpack.c.l.b16 %v863
    %v1028 = vunpack.c.h.b16 %v863
    %v1029 = vunpack.c.l.b16 %v864
    %v1030 = vunpack.c.h.b16 %v864
    %v1031 = vunpack.c.l.b16 %v865
    %v1032 = vunpack.c.h.b16 %v865
    %v1033 = vunpack.c.l.b16 %v866
    %v1034 = vunpack.c.h.b16 %v866
    %v1035 = vunpack.c.l.b16 %v867
    %v1036 = vunpack.c.h.b16 %v867
    %v1037 = vunpack.c.l.b16 %v868
    %v1038 = vunpack.c.h.b16 %v868
    %v1039 = vunpack.c.l.b16 %v869
    %v1040 = vunpack.c.h.b16 %v869
    %v1041 = vunpack.c.l.b16 %v870
    %v1042 = vunpack.c.h.b16 %v870
    %v1043 = vunpack.c.l.b16 %v871
    %v1044 = vunpack.c.h.b16 %v871
    %v1045 = vunpack.c.l.b16 %v872
    %v1046 = vunpack.c.h.b16 %v872
    %v1047 = vunpack.c.l.b16 %v873
    %v1048 = vunpack.c.h.b16 %v873
    %v1049 = vunpack.c.l.b16 %v874
    %v1050 = vunpack.c.h.b16 %v874
    %v1051 = vunpack.c.l.b16 %v875
    %v1052 = vunpack.c.h.b16 %v875
    %v1053 = vunpack.c.l.b16 %v876
    %v1054 = vunpack.c.h.b16 %v876
    %v1055 = vunpack.c.l.b16 %v877
    %v1056 = vunpack.c.h.b16 %v877
    %v1057 = vunpack.c.l.b16 %v878
    %v1058 = vunpack.c.h.b16 %v878
    %v1059 = vunpack.c.l.b16 %v879
    %v1060 = vunpack.c.h.b16 %v879
    %v1061 = vunpack.c.l.b16 %v880
    %v1062 = vunpack.c.h.b16 %v880
    %v1063 = vunpack.c.l.b16 %v881
    %v1064 = vunpack.c.h.b16 %v881
    %v1065 = vunpack.c.l.b16 %v882
    %v1066 = vunpack.c.h.b16 %v882
    %v1067 = vunpack.c.l.b16 %v883
    %v1068 = vunpack.c.h.b16 %v883
    %v1069 = vunpack.c.l.b16 %v884
    %v1070 = vunpack.c.h.b16 %v884
    %v1071 = vunpack.c.l.b16 %v885
    %v1072 = vunpack.c.h.b16 %v885
    %v1073 = vunpack.c.l.b16 %v886
    %v1074 = vunpack.c.h.b16 %v886
    %v1075 = vunpack.c.l.b16 %v887
    %v1076 = vunpack.c.h.b16 %v887
    %v1077 = vunpack.c.l.b16 %v888
    %v1078 = vunpack.c.h.b16 %v888
    %v1079 = vunpack.c.l.b16 %v889
    %v1080 = vunpack.c.h.b16 %v889
    %v1081 = vunpack.c.l.b16 %v890
    %v1082 = vunpack.c.h.b16 %v890
    %v1083 = vunpack.c.l.b16 %v891
    %v1084 = vunpack.c.h.b16 %v891
    %v1085 = vunpack.c.l.b16 %v892
    %v1086 = vunpack.c.h.b16 %v892
    %v1087 = vunpack.c.l.b16 %v893
    %v1088 = vunpack.c.h.b16 %v893
    %v1089 = vunpack.c.l.b16 %v894
    %v1090 = vunpack.c.h.b16 %v894
    %v1091 = vunpack.c.l.b16 %v895
    %v1092 = vunpack.c.h.b16 %v895
    %v1093 = vunpack.c.l.b16 %v896
    %v1094 = vunpack.c.h.b16 %v896
    %v1095 = vunpack.c.l.b16 %v897
    %v1096 = vunpack.c.h.b16 %v897
    %v1097 = vunpack.c.l.b16 %v898
    %v1098 = vunpack.c.h.b16 %v898
    %v1099 = vunpack.c.l.b16 %v899
    %v1100 = vunpack.c.h.b16 %v899
    %v1101 = vunpack.c.l.b16 %v900
    %v1102 = vunpack.c.h.b16 %v900
    %v1103 = vpack.c.b16 %v979, %v975
    %v1104 = vpack.c.b16 %v980, %v976
    %v1105 = vpack.c.b16 %v981, %v977
    %v1106 = vpack.c.b16 %v982, %v978
    %v1107 = vpack.c.b16 %v987, %v983
    %v1108 = vpack.c.b16 %v988, %v984
    %v1109 = vpack.c.b16 %v989, %v985
    %v1110 = vpack.c.b16 %v990, %v986
    %v1111 = vpack.c.b16 %v995, %v991
    %v1112 = vpack.c.b16 %v996, %v992
    %v1113 = vpack.c.b16 %v997, %v993
    %v1114 = vpack.c.b16 %v998, %v994
    %v1115 = vpack.c.b16 %v1003, %v999
    %v1116 = vpack.c.b16 %v1004, %v1000
    %v1117 = vpack.c.b16 %v1005, %v1001
    %v1118 = vpack.c.b16 %v1006, %v1002
    %v1119 = vpack.c.b16 %v1011, %v1007
    %v1120 = vpack.c.b16 %v1012, %v1008
    %v1121 = vpack.c.b16 %v1013, %v1009
    %v1122 = vpack.c.b16 %v1014, %v1010
    %v1123 = vpack.c.b16 %v1019, %v1015
    %v1124 = vpack.c.b16 %v1020, %v1016
    %v1125 = vpack.c.b16 %v1021, %v1017
    %v1126 = vpack.c.b16 %v1022, %v1018
    %v1127 = vpack.c.b16 %v1027, %v1023
    %v1128 = vpack.c.b16 %v1028, %v1024
    %v1129 = vpack.c.b16 %v1029, %v1025
    %v1130 = vpack.c.b16 %v1030, %v1026
    %v1131 = vpack.c.b16 %v1035, %v1031
    %v1132 = vpack.c.b16 %v1036, %v1032
    %v1133 = vpack.c.b16 %v1037, %v1033
    %v1134 = vpack.c.b16 %v1038, %v1034
    %v1135 = vpack.c.b16 %v1043, %v1039
    %v1136 = vpack.c.b16 %v1044, %v1040
    %v1137 = vpack.c.b16 %v1045, %v1041
    %v1138 = vpack.c.b16 %v1046, %v1042
    %v1139 = vpack.c.b16 %v1051, %v1047
    %v1140 = vpack.c.b16 %v1052, %v1048
    %v1141 = vpack.c.b16 %v1053, %v1049
    %v1142 = vpack.c.b16 %v1054, %v1050
    %v1143 = vpack.c.b16 %v1059, %v1055
    %v1144 = vpack.c.b16 %v1060, %v1056
    %v1145 = vpack.c.b16 %v1061, %v1057
    %v1146 = vpack.c.b16 %v1062, %v1058
    %v1147 = vpack.c.b16 %v1067, %v1063
    %v1148 = vpack.c.b16 %v1068, %v1064
    %v1149 = vpack.c.b16 %v1069, %v1065
    %v1150 = vpack.c.b16 %v1070, %v1066
    %v1151 = vpack.c.b16 %v1075, %v1071
    %v1152 = vpack.c.b16 %v1076, %v1072
    %v1153 = vpack.c.b16 %v1077, %v1073
    %v1154 = vpack.c.b16 %v1078, %v1074
    %v1155 = vpack.c.b16 %v1083, %v1079
    %v1156 = vpack.c.b16 %v1084, %v1080
    %v1157 = vpack.c.b16 %v1085, %v1081
    %v1158 = vpack.c.b16 %v1086, %v1082
    %v1159 = vpack.c.b16 %v1091, %v1087
    %v1160 = vpack.c.b16 %v1092, %v1088
    %v1161 = vpack.c.b16 %v1093, %v1089
    %v1162 = vpack.c.b16 %v1094, %v1090
    %v1163 = vpack.c.b16 %v1099, %v1095
    %v1164 = vpack.c.b16 %v1100, %v1096
    %v1165 = vpack.c.b16 %v1101, %v1097
    %v1166 = vpack.c.b16 %v1102, %v1098
    %1231 = vmatpush.bf16.msra.mxu0 %v1131
    %1232 = vmatpush.bf16.msra.mxu0 %v1127
    %1233 = vmatpush.bf16.msra.mxu0 %v1123
    %1234 = vmatpush.bf16.msra.mxu0 %v1119
    %1235 = vmatpush.bf16.msra.mxu0 %v1115
    %1236 = vmatpush.bf16.msra.mxu0 %v1111
    %1237 = vmatpush.bf16.msra.mxu0 %v1107
    %1238 = vmatpush.bf16.msra.mxu0 %v1103
    %1239 = vmatmul.bf16.gmra.mxu0 %v831
    %v1240 = vpop.f32.mrf.mxu0
    %v1241 = vadd.f32 %v903, %v1240
    %v1242 = vpop.f32.mrf.mxu0
    %1243 = vdwg.mxu0
    %1244 = vmatpush.bf16.msra.mxu0 %v1163
    %1245 = vmatpush.bf16.msra.mxu0 %v1159
    %1246 = vmatpush.bf16.msra.mxu0 %v1155
    %1247 = vmatpush.bf16.msra.mxu0 %v1151
    %1248 = vmatpush.bf16.msra.mxu0 %v1147
    %1249 = vmatpush.bf16.msra.mxu0 %v1143
    %1250 = vmatpush.bf16.msra.mxu0 %v1139
    %1251 = vmatpush.bf16.msra.mxu0 %v1135
    %1252 = vmatmul.bf16.gmra.mxu0 %v834
    %v1253 = vpop.f32.mrf.mxu0
    %v1254 = vadd.f32 %v1241, %v1253
    %v1255 = vpop.f32.mrf.mxu0
    %1256 = vdwg.mxu0
    %1257 = vmatpush.bf16.msra.mxu0 %v1132
    %1258 = vmatpush.bf16.msra.mxu0 %v1128
    %1259 = vmatpush.bf16.msra.mxu0 %v1124
    %1260 = vmatpush.bf16.msra.mxu0 %v1120
    %1261 = vmatpush.bf16.msra.mxu0 %v1116
    %1262 = vmatpush.bf16.msra.mxu0 %v1112
    %1263 = vmatpush.bf16.msra.mxu0 %v1108
    %1264 = vmatpush.bf16.msra.mxu0 %v1104
    %1265 = vmatmul.bf16.gmra.mxu0 %v831
    %v1266 = vpop.f32.mrf.mxu0
    %v1267 = vadd.f32 %v904, %v1266
    %v1268 = vpop.f32.mrf.mxu0
    %1269 = vdwg.mxu0
    %1270 = vmatpush.bf16.msra.mxu0 %v1164
    %1271 = vmatpush.bf16.msra.mxu0 %v1160
    %1272 = vmatpush.bf16.msra.mxu0 %v1156
    %1273 = vmatpush.bf16.msra.mxu0 %v1152
    %1274 = vmatpush.bf16.msra.mxu0 %v1148
    %1275 = vmatpush.bf16.msra.mxu0 %v1144
    %1276 = vmatpush.bf16.msra.mxu0 %v1140
    %1277 = vmatpush.bf16.msra.mxu0 %v1136
    %1278 = vmatmul.bf16.gmra.mxu0 %v834
    %v1279 = vpop.f32.mrf.mxu0
    %v1280 = vadd.f32 %v1267, %v1279
    %v1281 = vpop.f32.mrf.mxu0
    %1282 = vdwg.mxu0
    %1283 = vmatpush.bf16.msra.mxu0 %v1133
    %1284 = vmatpush.bf16.msra.mxu0 %v1129
    %1285 = vmatpush.bf16.msra.mxu0 %v1125
    %1286 = vmatpush.bf16.msra.mxu0 %v1121
    %1287 = vmatpush.bf16.msra.mxu0 %v1117
    %1288 = vmatpush.bf16.msra.mxu0 %v1113
    %1289 = vmatpush.bf16.msra.mxu0 %v1109
    %1290 = vmatpush.bf16.msra.mxu0 %v1105
    %1291 = vmatmul.bf16.gmra.mxu0 %v831
    %v1292 = vpop.f32.mrf.mxu0
    %v1293 = vadd.f32 %v905, %v1292
    %v1294 = vpop.f32.mrf.mxu0
    %1295 = vdwg.mxu0
    %1296 = vmatpush.bf16.msra.mxu0 %v1165
    %1297 = vmatpush.bf16.msra.mxu0 %v1161
    %1298 = vmatpush.bf16.msra.mxu0 %v1157
    %1299 = vmatpush.bf16.msra.mxu0 %v1153
    %1300 = vmatpush.bf16.msra.mxu0 %v1149
    %1301 = vmatpush.bf16.msra.mxu0 %v1145
    %1302 = vmatpush.bf16.msra.mxu0 %v1141
    %1303 = vmatpush.bf16.msra.mxu0 %v1137
    %1304 = vmatmul.bf16.gmra.mxu0 %v834
    %v1305 = vpop.f32.mrf.mxu0
    %v1306 = vadd.f32 %v1293, %v1305
    %v1307 = vpop.f32.mrf.mxu0
    %1308 = vdwg.mxu0
    %1309 = vmatpush.bf16.msra.mxu0 %v1134
    %1310 = vmatpush.bf16.msra.mxu0 %v1130
    %1311 = vmatpush.bf16.msra.mxu0 %v1126
    %1312 = vmatpush.bf16.msra.mxu0 %v1122
    %1313 = vmatpush.bf16.msra.mxu0 %v1118
    %1314 = vmatpush.bf16.msra.mxu0 %v1114
    %1315 = vmatpush.bf16.msra.mxu0 %v1110
    %1316 = vmatpush.bf16.msra.mxu0 %v1106
    %1317 = vmatmul.bf16.gmra.mxu0 %v831
    %v1318 = vpop.f32.mrf.mxu0
    %v1319 = vadd.f32 %v906, %v1318
    %v1320 = vpop.f32.mrf.mxu0
    %1321 = vdwg.mxu0
    %1322 = vmatpush.bf16.msra.mxu0 %v1166
    %1323 = vmatpush.bf16.msra.mxu0 %v1162
    %1324 = vmatpush.bf16.msra.mxu0 %v1158
    %1325 = vmatpush.bf16.msra.mxu0 %v1154
    %1326 = vmatpush.bf16.msra.mxu0 %v1150
    %1327 = vmatpush.bf16.msra.mxu0 %v1146
    %1328 = vmatpush.bf16.msra.mxu0 %v1142
    %1329 = vmatpush.bf16.msra.mxu0 %v1138
    %1330 = vmatmul.bf16.gmra.mxu0 %v834
    %v1331 = vpop.f32.mrf.mxu0
    %v1332 = vadd.f32 %v1319, %v1331
    %v1333 = vpop.f32.mrf.mxu0
    %1334 = vdwg.mxu0
    %v1335 = vxor.u32 %v1254, 2147483648
    %v1336 = vxor.u32 %v1280, 2147483648
    %v1337 = vxor.u32 %v1306, 2147483648
    %v1338 = vmul.f32 %v1335, 1.442695
    %v1339 = vpow.pop %v1338
    %v1340 = vmul.f32 %v1336, 1.442695
    %v1341 = vpow.pop %v1340
    %v1342 = vmul.f32 %v1337, 1.442695
    %v1343 = vpow.pop %v1342
    %v1344 = vadd.f32 %v1339, 1.0
    %v1345 = vadd.f32 %v1341, 1.0
    %v1346 = vadd.f32 %v1343, 1.0
    %v1347 = vrcp.pop %v1344
    %v1348 = vmul.f32 %v1344, %v1347
    %v1349 = vsub.f32 1.0, %v1348
    %v1350 = vmul.f32 %v1347, %v1349
    %v1351 = vadd.f32 %v1347, %v1350
    %vm1352 = vweird.f32 %v1344
    %vm1353 = vweird.f32 %v1347
    %vm1354 = vmor %vm1352, %vm1353
    %v1355 = vsel %vm1354, %v1347, %v1351
    %v1356 = vand.u32 2147483647, %v1344
    %vm1357 = vcmp.eq.f32.partialorder %v1356, 8.507059e+37
    %v1358 = vand.u32 %v1344, 2147483648
    %v1359 = vor.u32 1.1754944e-38, %v1358
    %v1360 = vsel %vm1357, %v1359, %v1355
    %v1361 = vmul.f32 1.0, %v1360
    %v1362 = vrcp.pop %v1345
    %v1363 = vmul.f32 %v1345, %v1362
    %v1364 = vsub.f32 1.0, %v1363
    %v1365 = vmul.f32 %v1362, %v1364
    %v1366 = vadd.f32 %v1362, %v1365
    %vm1367 = vweird.f32 %v1345
    %vm1368 = vweird.f32 %v1362
    %vm1369 = vmor %vm1367, %vm1368
    %v1370 = vsel %vm1369, %v1362, %v1366
    %v1371 = vand.u32 2147483647, %v1345
    %vm1372 = vcmp.eq.f32.partialorder %v1371, 8.507059e+37
    %v1373 = vand.u32 %v1345, 2147483648
    %v1374 = vor.u32 1.1754944e-38, %v1373
    %v1375 = vsel %vm1372, %v1374, %v1370
    %v1376 = vmul.f32 1.0, %v1375
    %v1377 = vrcp.pop %v1346
    %v1378 = vmul.f32 %v1346, %v1377
    %v1379 = vsub.f32 1.0, %v1378
    %v1380 = vmul.f32 %v1377, %v1379
    %v1381 = vadd.f32 %v1377, %v1380
    %vm1382 = vweird.f32 %v1346
    %vm1383 = vweird.f32 %v1377
    %vm1384 = vmor %vm1382, %vm1383
    %v1385 = vsel %vm1384, %v1377, %v1381
    %v1386 = vand.u32 2147483647, %v1346
    %vm1387 = vcmp.eq.f32.partialorder %v1386, 8.507059e+37
    %v1388 = vand.u32 %v1346, 2147483648
    %v1389 = vor.u32 1.1754944e-38, %v1388
    %v1390 = vsel %vm1387, %v1389, %v1385
    %v1391 = vmul.f32 1.0, %v1390
    %v1392 = vtanh.pop %v1332
    %v1393 = vmul.f32 %v1376, %v836
    %v1394 = vmul.f32 %v1361, %v1392
    %v1395 = vadd.f32 %v1393, %v1394
    %v1396 = vtanh.pop %v1395
    %v1397 = vmul.f32 %v1391, %v1396
    %1398 = vst [vmem:[#allocation15] sm:$0xff] %v830
    %s1399 = scalar_lea.vmem [#allocation15], 8
    %1400 = vst [vmem:[%s1399] sm:$0xff] %v1397
    %1401 = vst [vmem:[#allocation16] sm:$0xff] %v828
    %s1402 = scalar_lea.vmem [#allocation16], 8
    %1403 = vst [vmem:[%s1402] sm:$0xff] %v1395
    %v1404 = vpack.c.bf16 %v1397, %v1397
    %1405 = vst [vmem:[#allocation18] sm:$0xf] %v1404
    // Predicated region
    $region78: #{tpu_custom_call.1} parent=1 // pred_check
      _
    $region79: #{tpu_custom_call.1} parent=1 // pred_check_branch
      %1407 = sbr.rel (0) target = $region81
    $region80: #{tpu_custom_call.1} parent=1 // pred_region
      %1409 = vsyncadd [#allocation8], 0
      %s1410 = sshll.u32 [#allocation15], 4
      %s1411 = int_to_ptr.vmem [resolvable:$true] %s1410
      %s1412 = sshll.u32 %s8, 4
      %s1413 = int_to_ptr.hbm [resolvable:$true] %s1412
      %1418 = dma.vmem_to_hbm [thread:$0]  %s1411, 256, %s1413, [#allocation8], 128, 128, 8
    $region81: #{tpu_custom_call.1} parent=1 // pred_fallthru
      _
    // Predicated region
    $region82: #{tpu_custom_call.1} parent=1 // pred_check
      _
    $region83: #{tpu_custom_call.1} parent=1 // pred_check_branch
      %1420 = sbr.rel (0) target = $region85
    $region84: #{tpu_custom_call.1} parent=1 // pred_region
      %1422 = vsyncadd [#allocation17], 0
      %s1423 = sshll.u32 [#allocation16], 4
      %s1424 = int_to_ptr.vmem [resolvable:$true] %s1423
      %s1425 = sshll.u32 %s9, 4
      %s1426 = int_to_ptr.hbm [resolvable:$true] %s1425
      %1431 = dma.vmem_to_hbm [thread:$0]  %s1424, 256, %s1426, [#allocation17], 128, 128, 8
    $region85: #{tpu_custom_call.1} parent=1 // pred_fallthru
      _
    // Predicated region
    $region86: #{tpu_custom_call.1} parent=1 // pred_check
      _
    $region87: #{tpu_custom_call.1} parent=1 // pred_check_branch
      %1433 = sbr.rel (0) target = $region89
    $region88: #{tpu_custom_call.1} parent=1 // pred_region
      %1435 = vsyncadd [#allocation17], 0
      %s1437 = sshll.u32 [#allocation18], 4
      %s1438 = int_to_ptr.vmem [resolvable:$true] %s1437
      %s1439 = sshll.u32 %s10, 4
      %s1440 = int_to_ptr.hbm [resolvable:$true] %s1439
      %1442 = dma.vmem_to_hbm [thread:$0]  %s1438, 64, %s1440, [#allocation17]
    $region89: #{tpu_custom_call.1} parent=1 // pred_fallthru
      _
    // Predicated region
    $region90: #{tpu_custom_call.1} parent=1 // pred_check
      _
    $region91: #{tpu_custom_call.1} parent=1 // pred_check_branch
      %1444 = sbr.rel (0) target = $region93
    $region92: #{tpu_custom_call.1} parent=1 // pred_region
      %1446 = dma.done [#allocation8], 256
    $region93: #{tpu_custom_call.1} parent=1 // pred_fallthru
      _
    // Predicated region
    $region94: #{tpu_custom_call.1} parent=1 // pred_check
      _
    $region95: #{tpu_custom_call.1} parent=1 // pred_check_branch
      %1448 = sbr.rel (0) target = $region97
    $region96: #{tpu_custom_call.1} parent=1 // pred_region
      %1450 = dma.done [#allocation17], 256
    $region97: #{tpu_custom_call.1} parent=1 // pred_fallthru
      _
    // Predicated region
    $region98: #{tpu_custom_call.1} parent=1 // pred_check
      _
    $region99: #{tpu_custom_call.1} parent=1 // pred_check_branch
      %1452 = sbr.rel (0) target = $region101
    $region100: #{tpu_custom_call.1} parent=1 // pred_region
      %1454 = dma.done [#allocation17], 64
    $region101: #{tpu_custom_call.1} parent=1 // pred_fallthru
      _
    %1455 = vsyncpa [#allocation7], 1
    %1456 = vsyncpa [#allocation10], 1
    %1457 = vsyncpa [#allocation13], 1
    %1458 = vsyncpa [#allocation8], 1
    %1459 = vsyncpa [#allocation17], 1
  %1460 = vsyncmov [#allocation3]
  %s1461 = vpop.sfrf %1460
  %p1462 = scmp.eq.s32.totalorder %s1461, 0
  %p1463 = pneg %p1462
  %1465 = shalt.err (%p1463)
  %s1466 = scalar_lea.sflag [#allocation3], 1
  %1467 = vsyncmov %s1466
  %s1468 = vpop.sfrf %1467
  %p1469 = scmp.eq.s32.totalorder %s1468, 0
  %p1470 = pneg %p1469
  %1472 = shalt.err (%p1470)
  %s1473 = scalar_lea.sflag [#allocation3], 2
  %1474 = vsyncmov %s1473
  %s1475 = vpop.sfrf %1474
  %p1476 = scmp.eq.s32.totalorder %s1475, 0
  %p1477 = pneg %p1476
  %1479 = shalt.err (%p1477)
  %s1480 = scalar_lea.sflag [#allocation3], 3
  %1481 = vsyncmov %s1480
  %s1482 = vpop.sfrf %1481
  %p1483 = scmp.eq.s32.totalorder %s1482, 0
  %p1484 = pneg %p1483
  %1486 = shalt.err (%p1484)
  %s1487 = scalar_lea.sflag [#allocation3], 4
  %1488 = vsyncmov %s1487
  %s1489 = vpop.sfrf %1488
  %p1490 = scmp.eq.s32.totalorder %s1489, 0
  %p1491 = pneg %p1490
  %1493 = shalt.err (%p1491)
  %s1494 = scalar_lea.sflag [#allocation3], 5
  %1495 = vsyncmov %s1494
  %s1496 = vpop.sfrf %1495
  %p1497 = scmp.eq.s32.totalorder %s1496, 0
  %p1498 = pneg %p1497
  %1500 = shalt.err (%p1498)
  %s1501 = scalar_lea.sflag [#allocation3], 6
  %1502 = vsyncmov %s1501
  %s1503 = vpop.sfrf %1502
  %p1504 = scmp.eq.s32.totalorder %s1503, 0
  %p1505 = pneg %p1504
  %1507 = shalt.err (%p1505)
  %s1508 = scalar_lea.sflag [#allocation3], 7
  %1509 = vsyncmov %s1508
  %s1510 = vpop.sfrf %1509
  %p1511 = scmp.eq.s32.totalorder %s1510, 0
  %p1512 = pneg %p1511
  %1514 = shalt.err (%p1512)

</llo_original>
